<compile_context>
chip_gen: v5e
topology: v5e:2x2
jax: 0.10.0
libtpu: 0.0.40
codegen_flags: <defaults>
</compile_context>

<pallas_src>
import functools

import jax
import jax.numpy as jnp
from jax import lax
from jax.experimental import pallas as pl
from jax.experimental.pallas import tpu as pltpu

NEG_SLOPE = 0.1          # nn.LeakyReLU(0.1)
_MASK_NEG = -1e30        # additive mask for invalid conv positions (pre max-pool)


def _round_up(n, m):
    return ((n + m - 1) // m) * m


def make_textcnn_kernel(tap_starts, f_pad, n_branch):
    """Builds the kernel body; tap_starts[k] = first (128-aligned) lane fed by tap k."""
    n_taps = len(tap_starts)

    def kernel(x_ref, w_ref, b_ref, mask_ref, wfc_ref, bfc_ref, out_ref):
        # x_ref   : (Bt, Lp, H)  f32   (Lp is a multiple of 16)
        # w_ref   : (K, H, NF)   bf16  merged conv taps, zero-lane slabs for short branches
        # b_ref   : (1, NF)      f32   merged conv bias
        # mask_ref: (Lp, NF)     f32   0 at valid conv positions, -1e30 elsewhere
        # wfc_ref : (NF, C_pad)  bf16  padded FC weight
        # bfc_ref : (1, C_pad)   f32   padded FC bias
        # out_ref : (Bt, C_pad)  f32   logits (padded classes are zero)
        Bt, Lp, H = x_ref.shape
        rows = Bt * Lp

        # Single in-kernel f32 -> bf16 cast; the reshape only merges leading
        # dims on a 16-aligned sublane axis, so it is layout preserving.
        x = x_ref[...].astype(jnp.bfloat16).reshape(rows, H)

        # One lane-dense MXU matmul per conv tap, restricted to the 128-aligned
        # lane suffix that tap actually feeds.  Tap k's contribution to output
        # position l lives at row l+k, so shift it back with an XLU roll; the
        # circularly wrapped rows (incl. across batch boundaries) all fall on
        # positions the additive mask kills before the max-pool.
        taps = []
        for k in range(n_taps):
            lo = tap_starts[k]
            t = jnp.dot(x, w_ref[k, :, lo:], preferred_element_type=jnp.float32)
            if k > 0:
                t = pltpu.roll(t, shift=rows - k, axis=0)
            taps.append((lo, t))

        # Assemble each branch's 128-lane slab (all slices are lane aligned),
        # apply bias + LeakyReLU + validity mask, and max-pool over time.
        feats_slabs = []
        for j in range(n_branch):
            s_lo = j * f_pad
            parts = [t[:, s_lo - lo:s_lo - lo + f_pad] for lo, t in taps if lo <= s_lo]
            acc_j = parts[0]
            for p in parts[1:]:
                acc_j = acc_j + p
            acc_j = acc_j + b_ref[:, s_lo:s_lo + f_pad]
            acc_j = jnp.maximum(acc_j, NEG_SLOPE * acc_j)          # LeakyReLU(0.1)
            acc_j = acc_j.reshape(Bt, Lp, f_pad) + mask_ref[:, s_lo:s_lo + f_pad]
            feats_slabs.append(jnp.max(acc_j, axis=1))             # (Bt, f_pad)
        feats = (jnp.concatenate(feats_slabs, axis=-1)
                 if n_branch > 1 else feats_slabs[0])              # (Bt, NF)

        # Dropout is identity in eval mode.  Fully-connected layer.
        out = jnp.dot(feats.astype(jnp.bfloat16), wfc_ref[...],
                      preferred_element_type=jnp.float32) + bfc_ref[...]
        out_ref[...] = out

    return kernel


def pack_params(params, seq_len, lp, ks_list, f_pad, c_pad):
    """Merge / lane-pad the three conv branches + FC into the kernel layout.

    In a real deployment this runs once at model-load time, not per forward.
    Input layout (matching the original script): conv weight (ks, H, F) ==
    torch_conv_weight.permute(2, 1, 0), conv bias (1, F), fc weight (3F, C) ==
    torch_fc_weight.T, fc bias (1, C).
    """
    w2, b2, w3, b3, w4, b4, wfc, bfc = params
    ws, bs = (w2, w3, w4), (b2, b3, b4)
    H, F = w2.shape[1], w2.shape[2]
    C = wfc.shape[1]
    K = max(ks_list)
    NF = len(ks_list) * f_pad

    w_m = jnp.zeros((K, H, NF), jnp.float32)
    b_m = jnp.zeros((1, NF), jnp.float32)
    wfc_p = jnp.zeros((NF, c_pad), jnp.float32)
    for j, (ks, w, b) in enumerate(zip(ks_list, ws, bs)):
        lo = j * f_pad
        w_m = w_m.at[:ks, :, lo:lo + F].set(w)
        b_m = b_m.at[0, lo:lo + F].set(b[0])
        wfc_p = wfc_p.at[lo:lo + F, :C].set(wfc[j * F:(j + 1) * F, :])
    bfc_p = jnp.zeros((1, c_pad), jnp.float32).at[0, :C].set(bfc[0])

    # Additive mask over the padded time axis: position l is valid for branch j
    # iff l < seq_len - ks_j + 1.  This also kills the Lp padding rows and any
    # rows contaminated by the in-kernel circular tap shift.
    l_idx = jnp.arange(lp, dtype=jnp.int32)[:, None]                 # (Lp, 1)
    col_lout = jnp.concatenate(
        [jnp.full((f_pad,), seq_len - ks + 1, jnp.int32) for ks in ks_list])
    mask = jnp.where(l_idx < col_lout[None, :], 0.0, _MASK_NEG).astype(jnp.float32)

    return (w_m.astype(jnp.bfloat16), b_m, mask,
            wfc_p.astype(jnp.bfloat16), bfc_p)


def _estimate_vmem_bytes(block_b, lp, h, k, nf, c_pad):
    rows = block_b * lp
    x_buf = 2 * block_b * lp * h * 4                       # f32 x tile, double-buffered
    w_buf = k * h * nf * 2 + nf * 4 + lp * nf * 4 + nf * c_pad * 2 + c_pad * 4
    out_buf = 2 * block_b * c_pad * 4
    interm = rows * h * 2 + 5 * rows * nf * 4              # bf16 x + tap/acc temporaries
    return x_buf + w_buf + out_buf + interm


def _choose_tiling(batch, lp, h, k, nf, c_pad, budget_bytes=28 * 1024 * 1024):
    """Largest batch tile under the VMEM budget, keeping the grid length >= 2."""
    for blk in (128, 64, 32, 16, 8):
        if _estimate_vmem_bytes(blk, lp, h, k, nf, c_pad) > budget_bytes:
            continue
        if batch % blk == 0 and batch // blk >= 2:
            return blk, batch
    for blk in (64, 32, 16, 8):
        if _estimate_vmem_bytes(blk, lp, h, k, nf, c_pad) > budget_bytes:
            continue
        if batch > blk:
            return blk, _round_up(batch, blk)
    return 8, max(16, _round_up(batch, 8))


def textcnn_forward(x, params):
    """x: (B, L, H) float32 BERT last_encoding; returns logits (B, num_class)."""
    B, L, H = x.shape
    w2, _, w3, _, w4, _, wfc, _ = params
    ks_list = (w2.shape[0], w3.shape[0], w4.shape[0])
    F, C = w2.shape[2], wfc.shape[1]
    K = max(ks_list)
    assert list(ks_list) == sorted(ks_list), "branches must be sorted by kernel size"
    assert L >= K, "seq_length must be >= the largest conv kernel size"

    f_pad = _round_up(F, 128)            # 100 -> 128 in the real model
    c_pad = _round_up(C, 128)            # lane-dense output store
    n_branch = len(ks_list)
    NF = n_branch * f_pad

    # Per-tap first lane: tap k only feeds branches whose kernel size > k,
    # a 128-aligned suffix of the NF lanes when ks_list is sorted ascending.
    tap_starts = tuple(f_pad * sum(1 for ks in ks_list if ks <= k) for k in range(K))

    # Pad the time axis to a multiple of 16 so in-kernel reshapes/rolls are
    # layout preserving; the padded rows are masked before the max-pool.
    Lp = _round_up(L, 16)

    w_m, b_m, mask, wfc_p, bfc_p = pack_params(params, L, Lp, ks_list, f_pad, c_pad)

    block_b, b_pad = _choose_tiling(B, Lp, H, K, NF, c_pad)
    if b_pad != B or Lp != L:
        x = jnp.pad(x, ((0, b_pad - B), (0, Lp - L), (0, 0)))
    x = x.astype(jnp.float32)            # stays f32 in HBM; bf16 cast is in-kernel

    grid = (b_pad // block_b,)

    est_vmem = _estimate_vmem_bytes(block_b, Lp, H, K, NF, c_pad)
    vmem_limit = int(min(max(2 * est_vmem, 32 * 1024 * 1024), 48 * 1024 * 1024))

    lanes_total = sum(NF - lo for lo in tap_starts)
    flops = int(2 * b_pad * Lp * H * lanes_total + 2 * b_pad * NF * c_pad)
    bytes_accessed = int(x.size * 4 + w_m.size * 2 + b_m.size * 4 + mask.size * 4 +
                         wfc_p.size * 2 + bfc_p.size * 4 + b_pad * c_pad * 4)

    kernel = make_textcnn_kernel(tap_starts, f_pad, n_branch)

    # Grid-invariant operands: single-buffer them (their index_map is constant,
    # the second pipeline buffer is dead weight -> VMEM headroom on v7x).
    invariant = functools.partial(pl.BlockSpec, pipeline_mode=pl.Buffered(1))

    out = pl.pallas_call(
        kernel,
        grid=grid,
        in_specs=[
            pl.BlockSpec((block_b, Lp, H), lambda i: (i, 0, 0)),
            invariant(w_m.shape, lambda i: (0, 0, 0)),
            invariant(b_m.shape, lambda i: (0, 0)),
            invariant(mask.shape, lambda i: (0, 0)),
            invariant(wfc_p.shape, lambda i: (0, 0)),
            invariant(bfc_p.shape, lambda i: (0, 0)),
        ],
        out_specs=pl.BlockSpec((block_b, c_pad), lambda i: (i, 0)),
        out_shape=jax.ShapeDtypeStruct((b_pad, c_pad), jnp.float32),
        compiler_params=pltpu.CompilerParams(
            dimension_semantics=("parallel",),       # megacore-shard batch (v7x)
            vmem_limit_bytes=vmem_limit),
        cost_estimate=pl.CostEstimate(flops=flops, transcendentals=0,
                                      bytes_accessed=bytes_accessed),
    )(x, w_m, b_m, mask, wfc_p, bfc_p)
    return out[:B, :C]


def reference_forward(x, params):
    """Pure-JAX f32 reference matching the PyTorch forward (eval mode)."""
    w2, b2, w3, b3, w4, b4, wfc, bfc = params
    x_ncl = jnp.transpose(x, (0, 2, 1))              # (B, H, L) like torch
    feats = []
    for w, b in ((w2, b2), (w3, b3), (w4, b4)):
        w_oik = jnp.transpose(w, (2, 1, 0))          # (F, H, ks) torch layout
        conv = lax.conv_general_dilated(
            x_ncl, w_oik, window_strides=(1,), padding='VALID',
            dimension_numbers=('NCH', 'OIH', 'NCH'))
        conv = conv + b[0][None, :, None]
        relu = jnp.where(conv >= 0, conv, NEG_SLOPE * conv)
        feats.append(jnp.max(relu, axis=2))          # global max pool
    concat = jnp.concatenate(feats, axis=1)
    return concat @ wfc + bfc


if __name__ == "__main__":
    # Small, module-consistent shapes:
    B = 2            # batch
    L = 8            # seq_length
    H = 32           # stand-in for hidden_size_bert (=768)
    F = 16           # stand-in for num_filters (=100)
    C = 4            # num_class
    KS = (2, 3, 4)   # kernal_sizes

    key = jax.random.PRNGKey(0)
    keys = jax.random.split(key, 9)

    x = jax.random.normal(keys[0], (B, L, H), jnp.float32)

    w2 = 0.1 * jax.random.normal(keys[1], (KS[0], H, F), jnp.float32)
    b2 = 0.1 * jax.random.normal(keys[2], (1, F), jnp.float32)
    w3 = 0.1 * jax.random.normal(keys[3], (KS[1], H, F), jnp.float32)
    b3 = 0.1 * jax.random.normal(keys[4], (1, F), jnp.float32)
    w4 = 0.1 * jax.random.normal(keys[5], (KS[2], H, F), jnp.float32)
    b4 = 0.1 * jax.random.normal(keys[6], (1, F), jnp.float32)
    wfc = 0.1 * jax.random.normal(keys[7], (len(KS) * F, C), jnp.float32)
    bfc = 0.1 * jax.random.normal(keys[8], (1, C), jnp.float32)

    params = (w2, b2, w3, b3, w4, b4, wfc, bfc)

    out = jax.block_until_ready(textcnn_forward(x, params))
    ref = jax.block_until_ready(reference_forward(x, params))

    assert out.shape == (B, C)
    # bf16 MXU inputs (f32 accumulation) => relax tolerance vs the f32 reference.
    assert jnp.allclose(out, ref, atol=5e-2, rtol=5e-2), (out, ref)
    print("KERNEL_OK")
</pallas_src>

<mosaic_0001>
module attributes {stable_mosaic.version = 11 : i64} {
  func.func @kernel(%arg0: i32, %arg1: memref<8x16x32xf32, #tpu.memory_space<vmem>>, %arg2: memref<4x32x384xbf16, #tpu.memory_space<vmem>>, %arg3: memref<1x384xf32, #tpu.memory_space<vmem>>, %arg4: memref<16x384xf32, #tpu.memory_space<vmem>>, %arg5: memref<384x128xbf16, #tpu.memory_space<vmem>>, %arg6: memref<1x128xf32, #tpu.memory_space<vmem>>, %arg7: memref<8x128xf32, #tpu.memory_space<vmem>>) attributes {dimension_semantics = [#tpu.dimension_semantics<parallel>], iteration_bounds = array<i64: 2>, scalar_prefetch = 0 : i64, scratch_operands = 0 : i64, tpu.core_type = #tpu.core_type<tc>, window_params = [{transform_indices = @transform_0, window_bounds = array<i64: 8, 16, 32>}, {pipeline_mode = #tpu.pipeline_mode<synchronous>, transform_indices = @transform_1, window_bounds = array<i64: 4, 32, 384>}, {pipeline_mode = #tpu.pipeline_mode<synchronous>, transform_indices = @transform_2, window_bounds = array<i64: 1, 384>}, {pipeline_mode = #tpu.pipeline_mode<synchronous>, transform_indices = @transform_3, window_bounds = array<i64: 16, 384>}, {pipeline_mode = #tpu.pipeline_mode<synchronous>, transform_indices = @transform_4, window_bounds = array<i64: 384, 128>}, {pipeline_mode = #tpu.pipeline_mode<synchronous>, transform_indices = @transform_5, window_bounds = array<i64: 1, 128>}, {transform_indices = @transform_6, window_bounds = array<i64: 8, 128>}]} {
    %c0 = arith.constant 0 : index
    %c0_0 = arith.constant 0 : index
    %c0_1 = arith.constant 0 : index
    %0 = vector.load %arg1[%c0, %c0_0, %c0_1] : memref<8x16x32xf32, #tpu.memory_space<vmem>>, vector<8x16x32xf32>
    %1 = arith.truncf %0 : vector<8x16x32xf32> to vector<8x16x32xbf16>
    %2 = vector.shape_cast %1 : vector<8x16x32xbf16> to vector<128x32xbf16>
    %c0_2 = arith.constant 0 : index
    %c0_3 = arith.constant 0 : index
    %c0_4 = arith.constant 0 : index
    %3 = vector.load %arg2[%c0_2, %c0_3, %c0_4] : memref<4x32x384xbf16, #tpu.memory_space<vmem>>, vector<1x32x384xbf16>
    %4 = vector.shape_cast %3 : vector<1x32x384xbf16> to vector<32x384xbf16>
    %cst = arith.constant dense<0.000000e+00> : vector<128x384xf32>
    %5 = tpu.matmul %2, %4, %cst {dimension_numbers = #tpu.dot_dimension_numbers<[1], [0], [0], [1], [0, 0, 1, 1], [], []>} : vector<128x32xbf16>, vector<32x384xbf16>, vector<128x384xf32> -> vector<128x384xf32>
    %c1 = arith.constant 1 : index
    %c0_5 = arith.constant 0 : index
    %c0_6 = arith.constant 0 : index
    %6 = vector.load %arg2[%c1, %c0_5, %c0_6] : memref<4x32x384xbf16, #tpu.memory_space<vmem>>, vector<1x32x384xbf16>
    %7 = vector.shape_cast %6 : vector<1x32x384xbf16> to vector<32x384xbf16>
    %cst_7 = arith.constant dense<0.000000e+00> : vector<128x384xf32>
    %8 = tpu.matmul %2, %7, %cst_7 {dimension_numbers = #tpu.dot_dimension_numbers<[1], [0], [0], [1], [0, 0, 1, 1], [], []>} : vector<128x32xbf16>, vector<32x384xbf16>, vector<128x384xf32> -> vector<128x384xf32>
    %c127_i32 = arith.constant 127 : i32
    %9 = tpu.dynamic_rotate %8 by %c127_i32 dim 0 : vector<128x384xf32>, i32 -> vector<128x384xf32>
    %c2 = arith.constant 2 : index
    %c0_8 = arith.constant 0 : index
    %c128 = arith.constant 128 : index
    %10 = vector.load %arg2[%c2, %c0_8, %c128] : memref<4x32x384xbf16, #tpu.memory_space<vmem>>, vector<1x32x256xbf16>
    %11 = vector.shape_cast %10 : vector<1x32x256xbf16> to vector<32x256xbf16>
    %cst_9 = arith.constant dense<0.000000e+00> : vector<128x256xf32>
    %12 = tpu.matmul %2, %11, %cst_9 {dimension_numbers = #tpu.dot_dimension_numbers<[1], [0], [0], [1], [0, 0, 1, 1], [], []>} : vector<128x32xbf16>, vector<32x256xbf16>, vector<128x256xf32> -> vector<128x256xf32>
    %c126_i32 = arith.constant 126 : i32
    %13 = tpu.dynamic_rotate %12 by %c126_i32 dim 0 : vector<128x256xf32>, i32 -> vector<128x256xf32>
    %c3 = arith.constant 3 : index
    %c0_10 = arith.constant 0 : index
    %c256 = arith.constant 256 : index
    %14 = vector.load %arg2[%c3, %c0_10, %c256] : memref<4x32x384xbf16, #tpu.memory_space<vmem>>, vector<1x32x128xbf16>
    %15 = vector.shape_cast %14 : vector<1x32x128xbf16> to vector<32x128xbf16>
    %cst_11 = arith.constant dense<0.000000e+00> : vector<128x128xf32>
    %16 = tpu.matmul %2, %15, %cst_11 {dimension_numbers = #tpu.dot_dimension_numbers<[1], [0], [0], [1], [0, 0, 1, 1], [], []>} : vector<128x32xbf16>, vector<32x128xbf16>, vector<128x128xf32> -> vector<128x128xf32>
    %c125_i32 = arith.constant 125 : i32
    %17 = tpu.dynamic_rotate %16 by %c125_i32 dim 0 : vector<128x128xf32>, i32 -> vector<128x128xf32>
    %18 = vector.extract_strided_slice %5 {offsets = [0, 0], sizes = [128, 128], strides = [1, 1]} : vector<128x384xf32> to vector<128x128xf32>
    %19 = vector.extract_strided_slice %9 {offsets = [0, 0], sizes = [128, 128], strides = [1, 1]} : vector<128x384xf32> to vector<128x128xf32>
    %20 = arith.addf %18, %19 : vector<128x128xf32>
    %c0_12 = arith.constant 0 : index
    %c0_13 = arith.constant 0 : index
    %21 = vector.load %arg3[%c0_12, %c0_13] : memref<1x384xf32, #tpu.memory_space<vmem>>, vector<1x128xf32>
    %22 = vector.broadcast %21 : vector<1x128xf32> to vector<128x128xf32>
    %23 = arith.addf %20, %22 : vector<128x128xf32>
    %cst_14 = arith.constant 1.000000e-01 : f32
    %24 = vector.broadcast %cst_14 : f32 to vector<128x128xf32>
    %25 = arith.mulf %24, %23 : vector<128x128xf32>
    %26 = arith.maximumf %23, %25 : vector<128x128xf32>
    %27 = vector.shape_cast %26 : vector<128x128xf32> to vector<8x16x128xf32>
    %c0_15 = arith.constant 0 : index
    %c0_16 = arith.constant 0 : index
    %28 = vector.load %arg4[%c0_15, %c0_16] : memref<16x384xf32, #tpu.memory_space<vmem>>, vector<16x128xf32>
    %29 = vector.shape_cast %28 : vector<16x128xf32> to vector<1x16x128xf32>
    %30 = vector.broadcast %29 : vector<1x16x128xf32> to vector<8x16x128xf32>
    %31 = arith.addf %27, %30 : vector<8x16x128xf32>
    %cst_17 = arith.constant dense<0xFF800000> : vector<8x128xf32>
    %32 = vector.multi_reduction <maximumf>, %31, %cst_17 [1] : vector<8x16x128xf32> to vector<8x128xf32>
    %33 = vector.extract_strided_slice %5 {offsets = [0, 128], sizes = [128, 128], strides = [1, 1]} : vector<128x384xf32> to vector<128x128xf32>
    %34 = vector.extract_strided_slice %9 {offsets = [0, 128], sizes = [128, 128], strides = [1, 1]} : vector<128x384xf32> to vector<128x128xf32>
    %35 = vector.extract_strided_slice %13 {offsets = [0, 0], sizes = [128, 128], strides = [1, 1]} : vector<128x256xf32> to vector<128x128xf32>
    %36 = arith.addf %33, %34 : vector<128x128xf32>
    %37 = arith.addf %36, %35 : vector<128x128xf32>
    %c0_18 = arith.constant 0 : index
    %c128_19 = arith.constant 128 : index
    %38 = vector.load %arg3[%c0_18, %c128_19] : memref<1x384xf32, #tpu.memory_space<vmem>>, vector<1x128xf32>
    %39 = vector.broadcast %38 : vector<1x128xf32> to vector<128x128xf32>
    %40 = arith.addf %37, %39 : vector<128x128xf32>
    %cst_20 = arith.constant 1.000000e-01 : f32
    %41 = vector.broadcast %cst_20 : f32 to vector<128x128xf32>
    %42 = arith.mulf %41, %40 : vector<128x128xf32>
    %43 = arith.maximumf %40, %42 : vector<128x128xf32>
    %44 = vector.shape_cast %43 : vector<128x128xf32> to vector<8x16x128xf32>
    %c0_21 = arith.constant 0 : index
    %c128_22 = arith.constant 128 : index
    %45 = vector.load %arg4[%c0_21, %c128_22] : memref<16x384xf32, #tpu.memory_space<vmem>>, vector<16x128xf32>
    %46 = vector.shape_cast %45 : vector<16x128xf32> to vector<1x16x128xf32>
    %47 = vector.broadcast %46 : vector<1x16x128xf32> to vector<8x16x128xf32>
    %48 = arith.addf %44, %47 : vector<8x16x128xf32>
    %cst_23 = arith.constant dense<0xFF800000> : vector<8x128xf32>
    %49 = vector.multi_reduction <maximumf>, %48, %cst_23 [1] : vector<8x16x128xf32> to vector<8x128xf32>
    %50 = vector.extract_strided_slice %5 {offsets = [0, 256], sizes = [128, 128], strides = [1, 1]} : vector<128x384xf32> to vector<128x128xf32>
    %51 = vector.extract_strided_slice %9 {offsets = [0, 256], sizes = [128, 128], strides = [1, 1]} : vector<128x384xf32> to vector<128x128xf32>
    %52 = vector.extract_strided_slice %13 {offsets = [0, 128], sizes = [128, 128], strides = [1, 1]} : vector<128x256xf32> to vector<128x128xf32>
    %53 = arith.addf %50, %51 : vector<128x128xf32>
    %54 = arith.addf %53, %52 : vector<128x128xf32>
    %55 = arith.addf %54, %17 : vector<128x128xf32>
    %c0_24 = arith.constant 0 : index
    %c256_25 = arith.constant 256 : index
    %56 = vector.load %arg3[%c0_24, %c256_25] : memref<1x384xf32, #tpu.memory_space<vmem>>, vector<1x128xf32>
    %57 = vector.broadcast %56 : vector<1x128xf32> to vector<128x128xf32>
    %58 = arith.addf %55, %57 : vector<128x128xf32>
    %cst_26 = arith.constant 1.000000e-01 : f32
    %59 = vector.broadcast %cst_26 : f32 to vector<128x128xf32>
    %60 = arith.mulf %59, %58 : vector<128x128xf32>
    %61 = arith.maximumf %58, %60 : vector<128x128xf32>
    %62 = vector.shape_cast %61 : vector<128x128xf32> to vector<8x16x128xf32>
    %c0_27 = arith.constant 0 : index
    %c256_28 = arith.constant 256 : index
    %63 = vector.load %arg4[%c0_27, %c256_28] : memref<16x384xf32, #tpu.memory_space<vmem>>, vector<16x128xf32>
    %64 = vector.shape_cast %63 : vector<16x128xf32> to vector<1x16x128xf32>
    %65 = vector.broadcast %64 : vector<1x16x128xf32> to vector<8x16x128xf32>
    %66 = arith.addf %62, %65 : vector<8x16x128xf32>
    %cst_29 = arith.constant dense<0xFF800000> : vector<8x128xf32>
    %67 = vector.multi_reduction <maximumf>, %66, %cst_29 [1] : vector<8x16x128xf32> to vector<8x128xf32>
    %68 = tpu.concatenate %32, %49, %67 in 1 : vector<8x128xf32>, vector<8x128xf32>, vector<8x128xf32> -> vector<8x384xf32>
    %69 = arith.truncf %68 : vector<8x384xf32> to vector<8x384xbf16>
    %c0_30 = arith.constant 0 : index
    %c0_31 = arith.constant 0 : index
    %70 = vector.load %arg5[%c0_30, %c0_31] : memref<384x128xbf16, #tpu.memory_space<vmem>>, vector<384x128xbf16>
    %cst_32 = arith.constant dense<0.000000e+00> : vector<8x128xf32>
    %71 = tpu.matmul %69, %70, %cst_32 {dimension_numbers = #tpu.dot_dimension_numbers<[1], [0], [0], [1], [0, 0, 1, 1], [], []>} : vector<8x384xbf16>, vector<384x128xbf16>, vector<8x128xf32> -> vector<8x128xf32>
    %c0_33 = arith.constant 0 : index
    %c0_34 = arith.constant 0 : index
    %72 = vector.load %arg6[%c0_33, %c0_34] : memref<1x128xf32, #tpu.memory_space<vmem>>, vector<1x128xf32>
    %73 = vector.broadcast %72 : vector<1x128xf32> to vector<8x128xf32>
    %74 = arith.addf %71, %73 : vector<8x128xf32>
    %c0_35 = arith.constant 0 : index
    %c0_36 = arith.constant 0 : index
    %75 = vector.load %arg7[%c0_35, %c0_36] : memref<8x128xf32, #tpu.memory_space<vmem>>, vector<8x128xf32>
    tpu.vector_store %arg7[%c0_35, %c0_36], %74 {strides = array<i32>} : memref<8x128xf32, #tpu.memory_space<vmem>>, vector<8x128xf32>,
    return
  }
  func.func @transform_0(%arg0: i32) -> (i32, i32, i32) {
    %c0_i32 = arith.constant 0 : i32
    %c0_i32_0 = arith.constant 0 : i32
    %c0_i32_1 = arith.constant 0 : i32
    return %arg0, %c0_i32, %c0_i32_0 : i32, i32, i32
  }
  func.func @transform_1(%arg0: i32) -> (i32, i32, i32) {
    %c0_i32 = arith.constant 0 : i32
    %c0_i32_0 = arith.constant 0 : i32
    %c0_i32_1 = arith.constant 0 : i32
    %c0_i32_2 = arith.constant 0 : i32
    return %c0_i32, %c0_i32_0, %c0_i32_1 : i32, i32, i32
  }
  func.func @transform_2(%arg0: i32) -> (i32, i32) {
    %c0_i32 = arith.constant 0 : i32
    %c0_i32_0 = arith.constant 0 : i32
    %c0_i32_1 = arith.constant 0 : i32
    return %c0_i32, %c0_i32_0 : i32, i32
  }
  func.func @transform_3(%arg0: i32) -> (i32, i32) {
    %c0_i32 = arith.constant 0 : i32
    %c0_i32_0 = arith.constant 0 : i32
    %c0_i32_1 = arith.constant 0 : i32
    return %c0_i32, %c0_i32_0 : i32, i32
  }
  func.func @transform_4(%arg0: i32) -> (i32, i32) {
    %c0_i32 = arith.constant 0 : i32
    %c0_i32_0 = arith.constant 0 : i32
    %c0_i32_1 = arith.constant 0 : i32
    return %c0_i32, %c0_i32_0 : i32, i32
  }
  func.func @transform_5(%arg0: i32) -> (i32, i32) {
    %c0_i32 = arith.constant 0 : i32
    %c0_i32_0 = arith.constant 0 : i32
    %c0_i32_1 = arith.constant 0 : i32
    return %c0_i32, %c0_i32_0 : i32, i32
  }
  func.func @transform_6(%arg0: i32) -> (i32, i32) {
    %c0_i32 = arith.constant 0 : i32
    %c0_i32_0 = arith.constant 0 : i32
    return %arg0, %c0_i32 : i32, i32
  }
}

</mosaic_0001>

<llo_original>
// kernel: tpu_custom_call.1
$region0: #{tpu_custom_call.1}
  #allocation0 [shape = 'u32[]', space=smem, size = 0x4, offset = 0x4, fixed_abs, tag = 'smem constant byte address 0x4 - core index']
  #allocation1 [shape = 'u32[72,128]{1,0:T(1,128)}', space=vmem, size = 0x9000, scoped, tag = 'internal scratch']
  %s0 = inlined_call_operand.hbm [shape: f32[16,16,32], index: 0, kind: input, shape index: {}]
  %s1 = inlined_call_operand.hbm [shape: bf16[4,32,384], index: 1, kind: input, shape index: {}]
  %s2 = inlined_call_operand.hbm [shape: f32[1,384], index: 2, kind: input, shape index: {}]
  %s3 = inlined_call_operand.hbm [shape: f32[16,384], index: 3, kind: input, shape index: {}]
  %s4 = inlined_call_operand.hbm [shape: bf16[384,128], index: 4, kind: input, shape index: {}]
  %s5 = inlined_call_operand.vmem [shape: f32[1,128], index: 5, kind: input, shape index: {}]
  %s6 = inlined_call_operand.hbm [shape: f32[16,128], index: 6, kind: output, shape index: {}]
  %s7 = sld [smem:[#allocation0]]
  $region77: #{tpu_custom_call.1} parent=0
    _
  %s9 = ssub.s32 1, %s7
  %s10 = scalar_select 0, %s9, %s7
  $region1: #{tpu_custom_call.1} parent=0
    #allocation2 [shape = 'u8[131072]{0}', space=vmem, size = 0x20000, scoped, tag = 'input window, operand 0']
    #allocation3 [shape = 's32[2]{0}', space=sflag, size = 0x8, scoped, tag = 'scoped memory for tpu_custom_call.1']
    #allocation4 [shape = 's32[2]{0}', space=sflag, size = 0x8, scoped, tag = 'scoped memory for tpu_custom_call.1']
    #allocation5 [shape = 'u8[98304]{0}', space=vmem, size = 0x18000, scoped, tag = 'input window, operand 1, single buffered']
    #allocation6 [shape = 's32[1]{0}', space=sflag, size = 0x4, scoped, tag = 'scoped memory for tpu_custom_call.1']
    #allocation7 [shape = 'u8[1536]{0}', space=vmem, size = 0x800, scoped, tag = 'input window, operand 2, single buffered']
    #allocation8 [shape = 'u8[24576]{0}', space=vmem, size = 0x6000, scoped, tag = 'input window, operand 3, single buffered']
    #allocation9 [shape = 's32[1]{0}', space=sflag, size = 0x4, scoped, tag = 'scoped memory for tpu_custom_call.1']
    #allocation10 [shape = 'u8[98304]{0}', space=vmem, size = 0x18000, scoped, tag = 'input window, operand 4, single buffered']
    #allocation11 [shape = 'u8[8192]{0}', space=vmem, size = 0x2000, scoped, tag = 'output window, operand 0']
    %11 = vsyncpa [#allocation3], 0
    %s12 = scalar_lea.sflag [#allocation3], 1
    %13 = vsyncpa %s12, 0
    %14 = vsyncpa [#allocation6], 0
    %15 = vsyncpa [#allocation9], 0
    %16 = vsyncpa [#allocation4], 0
    %s17 = scalar_lea.sflag [#allocation4], 1
    %18 = vsyncpa %s17, 0
    loop: start=0, step=1, limit=4
    $region2: #{tpu_custom_call.1} parent=1 // loop_pre_header
      _
    $region3: #{tpu_custom_call.1} parent=1 // loop_header
      %s20 = sphi 0, %s24
      %p21 = scmp.ge.s32.totalorder %s20, 4
      %s30 = sphi 0, %s32
      %s33 = sphi 0, %s30
      %s34 = sphi 0, %s33
      %s50 = sphi 0, %s34
      %s54 = sphi 0, %s54
      %s56 = sphi 0, %s54
      %s57 = sphi 0, %s56
      %s71 = sphi 0, %s57
      %s75 = sphi 0, %s75
      %s77 = sphi 0, %s75
      %s78 = sphi 0, %s77
      %s92 = sphi 0, %s78
      %s96 = sphi 0, %s96
      %s98 = sphi 0, %s96
      %s99 = sphi 0, %s98
      %s113 = sphi 0, %s99
      %s117 = sphi 0, %s117
      %s119 = sphi 0, %s117
      %s120 = sphi 0, %s119
      %s134 = sphi 0, %s120
      %s138 = sphi 0, %s138
      %s140 = sphi 0, %s138
      %s141 = sphi 0, %s140
      %s155 = sphi 0, %s141
      %s161 = sphi 0, %s163
      %s164 = sphi 0, %s161
      %s165 = sphi 0, %s164
      %s181 = sphi 0, %s165
    $region4: #{tpu_custom_call.1} parent=1 // loop_header_branch
      %23 = sbr.rel (%p21) target = $region8
    $region5: #{tpu_custom_call.1} parent=1 // loop_body
      %s25 = ssub.s32 %s20, 1
      %s26 = ssub.s32 %s20, 2
      %s27 = sadd.s32 %s20, 1
      %s28 = ssub.s32 %s20, %s27
      %p29 = scmp.eq.s32.totalorder %s28, 0
      %s31 = sadd.s32 %s30, 1
      %s32 = scalar_select %p29, %s30, %s31
      %p35 = pneg %p29
      %p36 = scmp.eq.s32.totalorder %s20, 1
      %p37 = por %p35, %p36
      %p38 = scmp.ne.s32.totalorder %s30, %s33
      %p39 = scmp.eq.s32.totalorder %s20, 0
      %p40 = por %p38, %p39
      %p41 = scmp.ne.s32.totalorder %s30, %s33
      %p42 = scmp.eq.s32.totalorder %s25, 1
      %p43 = por %p41, %p42
      %p44 = scmp.ne.s32.totalorder %s33, %s34
      %p45 = scmp.eq.s32.totalorder %s25, 0
      %p46 = por %p44, %p45
      %p47 = scmp.ne.s32.totalorder %s33, %s34
      %p48 = scmp.eq.s32.totalorder %s26, 1
      %p49 = por %p47, %p48
      %p51 = scmp.ne.s32.totalorder %s34, %s50
      %p52 = scmp.eq.s32.totalorder %s26, 0
      %p53 = por %p51, %p52
      %s55 = sadd.s32 %s54, 1
      %p58 = scmp.eq.s32.totalorder %s20, 1
      %p59 = scmp.ne.s32.totalorder %s54, %s56
      %p60 = scmp.eq.s32.totalorder %s20, 0
      %p61 = por %p59, %p60
      %p62 = scmp.ne.s32.totalorder %s54, %s56
      %p63 = scmp.eq.s32.totalorder %s25, 1
      %p64 = por %p62, %p63
      %p65 = scmp.ne.s32.totalorder %s56, %s57
      %p66 = scmp.eq.s32.totalorder %s25, 0
      %p67 = por %p65, %p66
      %p68 = scmp.ne.s32.totalorder %s56, %s57
      %p69 = scmp.eq.s32.totalorder %s26, 1
      %p70 = por %p68, %p69
      %p72 = scmp.ne.s32.totalorder %s57, %s71
      %p73 = scmp.eq.s32.totalorder %s26, 0
      %p74 = por %p72, %p73
      %s76 = sadd.s32 %s75, 1
      %p79 = scmp.eq.s32.totalorder %s20, 1
      %p80 = scmp.ne.s32.totalorder %s75, %s77
      %p81 = scmp.eq.s32.totalorder %s20, 0
      %p82 = por %p80, %p81
      %p83 = scmp.ne.s32.totalorder %s75, %s77
      %p84 = scmp.eq.s32.totalorder %s25, 1
      %p85 = por %p83, %p84
      %p86 = scmp.ne.s32.totalorder %s77, %s78
      %p87 = scmp.eq.s32.totalorder %s25, 0
      %p88 = por %p86, %p87
      %p89 = scmp.ne.s32.totalorder %s77, %s78
      %p90 = scmp.eq.s32.totalorder %s26, 1
      %p91 = por %p89, %p90
      %p93 = scmp.ne.s32.totalorder %s78, %s92
      %p94 = scmp.eq.s32.totalorder %s26, 0
      %p95 = por %p93, %p94
      %s97 = sadd.s32 %s96, 1
      %p100 = scmp.eq.s32.totalorder %s20, 1
      %p101 = scmp.ne.s32.totalorder %s96, %s98
      %p102 = scmp.eq.s32.totalorder %s20, 0
      %p103 = por %p101, %p102
      %p104 = scmp.ne.s32.totalorder %s96, %s98
      %p105 = scmp.eq.s32.totalorder %s25, 1
      %p106 = por %p104, %p105
      %p107 = scmp.ne.s32.totalorder %s98, %s99
      %p108 = scmp.eq.s32.totalorder %s25, 0
      %p109 = por %p107, %p108
      %p110 = scmp.ne.s32.totalorder %s98, %s99
      %p111 = scmp.eq.s32.totalorder %s26, 1
      %p112 = por %p110, %p111
      %p114 = scmp.ne.s32.totalorder %s99, %s113
      %p115 = scmp.eq.s32.totalorder %s26, 0
      %p116 = por %p114, %p115
      %s118 = sadd.s32 %s117, 1
      %p121 = scmp.eq.s32.totalorder %s20, 1
      %p122 = scmp.ne.s32.totalorder %s117, %s119
      %p123 = scmp.eq.s32.totalorder %s20, 0
      %p124 = por %p122, %p123
      %p125 = scmp.ne.s32.totalorder %s117, %s119
      %p126 = scmp.eq.s32.totalorder %s25, 1
      %p127 = por %p125, %p126
      %p128 = scmp.ne.s32.totalorder %s119, %s120
      %p129 = scmp.eq.s32.totalorder %s25, 0
      %p130 = por %p128, %p129
      %p131 = scmp.ne.s32.totalorder %s119, %s120
      %p132 = scmp.eq.s32.totalorder %s26, 1
      %p133 = por %p131, %p132
      %p135 = scmp.ne.s32.totalorder %s120, %s134
      %p136 = scmp.eq.s32.totalorder %s26, 0
      %p137 = por %p135, %p136
      %s139 = sadd.s32 %s138, 1
      %p142 = scmp.eq.s32.totalorder %s20, 1
      %p143 = scmp.ne.s32.totalorder %s138, %s140
      %p144 = scmp.eq.s32.totalorder %s20, 0
      %p145 = por %p143, %p144
      %p146 = scmp.ne.s32.totalorder %s138, %s140
      %p147 = scmp.eq.s32.totalorder %s25, 1
      %p148 = por %p146, %p147
      %p149 = scmp.ne.s32.totalorder %s140, %s141
      %p150 = scmp.eq.s32.totalorder %s25, 0
      %p151 = por %p149, %p150
      %p152 = scmp.ne.s32.totalorder %s140, %s141
      %p153 = scmp.eq.s32.totalorder %s26, 1
      %p154 = por %p152, %p153
      %p156 = scmp.ne.s32.totalorder %s141, %s155
      %p157 = scmp.eq.s32.totalorder %s26, 0
      %p158 = por %p156, %p157
      %s159 = ssub.s32 %s20, %s27
      %p160 = scmp.eq.s32.totalorder %s159, 0
      %s162 = sadd.s32 %s161, 1
      %s163 = scalar_select %p160, %s161, %s162
      %p166 = pneg %p160
      %p167 = scmp.eq.s32.totalorder %s20, 1
      %p168 = por %p166, %p167
      %p169 = scmp.ne.s32.totalorder %s161, %s164
      %p170 = scmp.eq.s32.totalorder %s20, 0
      %p171 = por %p169, %p170
      %p172 = scmp.ne.s32.totalorder %s161, %s164
      %p173 = scmp.eq.s32.totalorder %s25, 1
      %p174 = por %p172, %p173
      %p175 = scmp.ne.s32.totalorder %s164, %s165
      %p176 = scmp.eq.s32.totalorder %s25, 0
      %p177 = por %p175, %p176
      %p178 = scmp.ne.s32.totalorder %s164, %s165
      %p179 = scmp.eq.s32.totalorder %s26, 1
      %p180 = por %p178, %p179
      %p182 = scmp.ne.s32.totalorder %s165, %s181
      %p183 = scmp.eq.s32.totalorder %s26, 0
      %p184 = por %p182, %p183
      %p185 = scmp.le.s32.totalorder 1, %s20
      %p186 = scmp.lt.s32.totalorder %s20, 3
      %p187 = pnand %p185, %p186
      %p188 = pneg %p187
      // Predicated region
      $region9: #{tpu_custom_call.1} parent=5 // pred_check
        _
      $region10: #{tpu_custom_call.1} parent=5 // pred_check_branch
        %190 = sbr.rel (%p187) target = $region12
      $region11: #{tpu_custom_call.1} parent=5 // pred_region
        %s191 = ssub.s32 %s20, 1
        // Predicated region
        $region13: #{tpu_custom_call.1} parent=11 // pred_check
          %p192 = pneg %p67
        $region14: #{tpu_custom_call.1} parent=11 // pred_check_branch
          %194 = sbr.rel (%p192) target = $region16
        $region15: #{tpu_custom_call.1} parent=11 // pred_region
          %196 = vsyncadd [#allocation6], 0
          %s197 = sshll.u32 %s1, 4
          %s198 = int_to_ptr.hbm [resolvable:$true] %s197
          %s199 = sshll.u32 [#allocation5], 4
          %s200 = int_to_ptr.vmem [resolvable:$true] %s199
          %205 = dma.hbm_to_vmem [thread:$0]  %s198, 3072, %s200, [#allocation6], 192, 192, 12
        $region16: #{tpu_custom_call.1} parent=11 // pred_fallthru
          _
        // Predicated region
        $region17: #{tpu_custom_call.1} parent=11 // pred_check
          %p206 = pneg %p88
        $region18: #{tpu_custom_call.1} parent=11 // pred_check_branch
          %208 = sbr.rel (%p206) target = $region20
        $region19: #{tpu_custom_call.1} parent=11 // pred_region
          %210 = vsyncadd [#allocation6], 0
          %s212 = sshll.u32 %s2, 4
          %s213 = int_to_ptr.hbm [resolvable:$true] %s212
          %s214 = sshll.u32 [#allocation7], 4
          %s215 = int_to_ptr.vmem [resolvable:$true] %s214
          %217 = dma.hbm_to_vmem [thread:$0]  %s213, 48, %s215, [#allocation6]
        $region20: #{tpu_custom_call.1} parent=11 // pred_fallthru
          _
        // Predicated region
        $region21: #{tpu_custom_call.1} parent=11 // pred_check
          %p218 = pneg %p109
        $region22: #{tpu_custom_call.1} parent=11 // pred_check_branch
          %220 = sbr.rel (%p218) target = $region24
        $region23: #{tpu_custom_call.1} parent=11 // pred_region
          %222 = vsyncadd [#allocation9], 0
          %s223 = sshll.u32 %s3, 4
          %s224 = int_to_ptr.hbm [resolvable:$true] %s223
          %s225 = sshll.u32 [#allocation8], 4
          %s226 = int_to_ptr.vmem [resolvable:$true] %s225
          %231 = dma.hbm_to_vmem [thread:$0]  %s224, 768, %s226, [#allocation9], 384, 384, 24
        $region24: #{tpu_custom_call.1} parent=11 // pred_fallthru
          _
        // Predicated region
        $region25: #{tpu_custom_call.1} parent=11 // pred_check
          %p232 = pneg %p130
        $region26: #{tpu_custom_call.1} parent=11 // pred_check_branch
          %234 = sbr.rel (%p232) target = $region28
        $region27: #{tpu_custom_call.1} parent=11 // pred_region
          %236 = vsyncadd [#allocation9], 0
          %s237 = sshll.u32 %s4, 4
          %s238 = int_to_ptr.hbm [resolvable:$true] %s237
          %s239 = sshll.u32 [#allocation10], 4
          %s240 = int_to_ptr.vmem [resolvable:$true] %s239
          %245 = dma.hbm_to_vmem [thread:$0]  %s238, 3072, %s240, [#allocation9], 64, 64, 4
        $region28: #{tpu_custom_call.1} parent=11 // pred_fallthru
          _
        // Predicated region
        $region29: #{tpu_custom_call.1} parent=11 // pred_check
          %p246 = pneg %p151
        $region30: #{tpu_custom_call.1} parent=11 // pred_check_branch
          %248 = sbr.rel (%p246) target = $region32
        $region31: #{tpu_custom_call.1} parent=11 // pred_region
          _
        $region32: #{tpu_custom_call.1} parent=11 // pred_fallthru
          _
      $region12: #{tpu_custom_call.1} parent=5 // pred_fallthru
        _
      %p249 = scmp.lt.s32.totalorder %s20, 2
      // Predicated region
      $region33: #{tpu_custom_call.1} parent=5 // pred_check
        %p250 = pneg %p249
      $region34: #{tpu_custom_call.1} parent=5 // pred_check_branch
        %252 = sbr.rel (%p250) target = $region36
      $region35: #{tpu_custom_call.1} parent=5 // pred_region
        // Predicated region
        $region37: #{tpu_custom_call.1} parent=35 // pred_check
          %p253 = pneg %p40
        $region38: #{tpu_custom_call.1} parent=35 // pred_check_branch
          %255 = sbr.rel (%p253) target = $region40
        $region39: #{tpu_custom_call.1} parent=35 // pred_region
          %s256 = sand.u32 %s30, 1
          %s257 = scalar_lea.sflag [#allocation3], %s256
          %s258 = sand.u32 %s30, 1
          %s259 = smul.addr %s258, 128
          %s260 = scalar_lea.vmem [#allocation2], %s259
          %s261 = smul.u32 8, %s20
          %263 = vsyncadd %s257, 0
          %s264 = smul.addr %s261, 2
          %s265 = smul.addr %s264, 8
          %s266 = scalar_lea.hbm %s0, %s265
          %s267 = sshll.u32 %s266, 4
          %s268 = int_to_ptr.hbm [resolvable:$true] %s267
          %s269 = sshll.u32 %s260, 4
          %s270 = int_to_ptr.vmem [resolvable:$true] %s269
          %275 = dma.hbm_to_vmem [thread:$0]  %s268, 2048, %s270, %s257, 128, 128, 8
        $region40: #{tpu_custom_call.1} parent=35 // pred_fallthru
          _
      $region36: #{tpu_custom_call.1} parent=5 // pred_fallthru
        _
      %p276 = scmp.le.s32.totalorder 1, %s20
      %p277 = scmp.lt.s32.totalorder %s20, 3
      %p278 = pnand %p276, %p277
      %p279 = pneg %p278
      // Predicated region
      $region41: #{tpu_custom_call.1} parent=5 // pred_check
        _
      $region42: #{tpu_custom_call.1} parent=5 // pred_check_branch
        %281 = sbr.rel (%p278) target = $region44
      $region43: #{tpu_custom_call.1} parent=5 // pred_region
        %s282 = ssub.s32 %s20, 1
        %s283 = sand.u32 %s33, 1
        %s284 = scalar_lea.sflag [#allocation3], %s283
        %s285 = sand.u32 %s33, 1
        %s286 = smul.addr %s285, 128
        %s287 = scalar_lea.vmem [#allocation2], %s286
        // Predicated region
        $region45: #{tpu_custom_call.1} parent=43 // pred_check
          %p288 = pneg %p46
        $region46: #{tpu_custom_call.1} parent=43 // pred_check_branch
          %290 = sbr.rel (%p288) target = $region48
        $region47: #{tpu_custom_call.1} parent=43 // pred_region
          %292 = dma.done %s284, 2048
        $region48: #{tpu_custom_call.1} parent=43 // pred_fallthru
          _
        // Predicated region
        $region49: #{tpu_custom_call.1} parent=43 // pred_check
          %p293 = pneg %p67
        $region50: #{tpu_custom_call.1} parent=43 // pred_check_branch
          %295 = sbr.rel (%p293) target = $region52
        $region51: #{tpu_custom_call.1} parent=43 // pred_region
          %297 = dma.done [#allocation6], 3072
        $region52: #{tpu_custom_call.1} parent=43 // pred_fallthru
          _
        // Predicated region
        $region53: #{tpu_custom_call.1} parent=43 // pred_check
          %p298 = pneg %p88
        $region54: #{tpu_custom_call.1} parent=43 // pred_check_branch
          %300 = sbr.rel (%p298) target = $region56
        $region55: #{tpu_custom_call.1} parent=43 // pred_region
          %302 = dma.done [#allocation6], 48
        $region56: #{tpu_custom_call.1} parent=43 // pred_fallthru
          _
        // Predicated region
        $region57: #{tpu_custom_call.1} parent=43 // pred_check
          %p303 = pneg %p109
        $region58: #{tpu_custom_call.1} parent=43 // pred_check_branch
          %305 = sbr.rel (%p303) target = $region60
        $region59: #{tpu_custom_call.1} parent=43 // pred_region
          %307 = dma.done [#allocation9], 768
        $region60: #{tpu_custom_call.1} parent=43 // pred_fallthru
          _
        // Predicated region
        $region61: #{tpu_custom_call.1} parent=43 // pred_check
          %p308 = pneg %p130
        $region62: #{tpu_custom_call.1} parent=43 // pred_check_branch
          %310 = sbr.rel (%p308) target = $region64
        $region63: #{tpu_custom_call.1} parent=43 // pred_region
          %312 = dma.done [#allocation9], 3072
        $region64: #{tpu_custom_call.1} parent=43 // pred_fallthru
          _
        %s313 = sand.u32 %s33, 1
        %s314 = scalar_lea.sflag [#allocation3], %s313
        %s315 = sand.u32 %s33, 1
        %s316 = smul.addr %s315, 128
        %s317 = scalar_lea.vmem [#allocation2], %s316
        %p318 = pneg %p46
        %p319 = pneg %p43
        %p320 = pneg %p67
        %p321 = pneg %p64
        %p322 = pneg %p88
        %p323 = pneg %p85
        %p324 = pneg %p109
        %p325 = pneg %p106
        %p326 = pneg %p130
        %p327 = pneg %p127
        %p328 = pneg %p151
        %p329 = pneg %p148
        %p330 = pneg %p177
        %p331 = pneg %p174
        %s332 = sand.u32 %s164, 1
        %s333 = scalar_lea.sflag [#allocation4], %s332
        %s334 = sand.u32 %s164, 1
        %s335 = smul.addr %s334, 8
        %s336 = scalar_lea.vmem [#allocation11], %s335
        %s337 = smul.u32 8, %s25
        %v339 = vld [vmem:[%s287] sm:$0xff]
        %v340 = vld [vmem:[%s287 + $0x8] sm:$0xff]
        %v341 = vld [vmem:[%s287 + $0x10] sm:$0xff]
        %v342 = vld [vmem:[%s287 + $0x18] sm:$0xff]
        %v343 = vld [vmem:[%s287 + $0x20] sm:$0xff]
        %v344 = vld [vmem:[%s287 + $0x28] sm:$0xff]
        %v345 = vld [vmem:[%s287 + $0x30] sm:$0xff]
        %v346 = vld [vmem:[%s287 + $0x38] sm:$0xff]
        %v347 = vld [vmem:[%s287 + $0x40] sm:$0xff]
        %v348 = vld [vmem:[%s287 + $0x48] sm:$0xff]
        %v349 = vld [vmem:[%s287 + $0x50] sm:$0xff]
        %v350 = vld [vmem:[%s287 + $0x58] sm:$0xff]
        %v351 = vld [vmem:[%s287 + $0x60] sm:$0xff]
        %v352 = vld [vmem:[%s287 + $0x68] sm:$0xff]
        %v353 = vld [vmem:[%s287 + $0x70] sm:$0xff]
        %v354 = vld [vmem:[%s287 + $0x78] sm:$0xff]
        %v355 = vpack.c.bf16 %v339, %v339
        %v356 = vpack.c.bf16 %v340, %v340
        %v357 = vpack.c.bf16 %v341, %v341
        %v358 = vpack.c.bf16 %v342, %v342
        %v359 = vpack.c.bf16 %v343, %v343
        %v360 = vpack.c.bf16 %v344, %v344
        %v361 = vpack.c.bf16 %v345, %v345
        %v362 = vpack.c.bf16 %v346, %v346
        %v363 = vpack.c.bf16 %v347, %v347
        %v364 = vpack.c.bf16 %v348, %v348
        %v365 = vpack.c.bf16 %v349, %v349
        %v366 = vpack.c.bf16 %v350, %v350
        %v367 = vpack.c.bf16 %v351, %v351
        %v368 = vpack.c.bf16 %v352, %v352
        %v369 = vpack.c.bf16 %v353, %v353
        %v370 = vpack.c.bf16 %v354, %v354
        %v371 = vld [vmem:[#allocation5] sm:$0xff]
        %v372 = vld [vmem:[#allocation5 + $0x8] sm:$0xf]
        %v373 = vld [vmem:[#allocation5 + $0xc] sm:$0xff]
        %v374 = vld [vmem:[#allocation5 + $0x14] sm:$0xf]
        %v375 = vld [vmem:[#allocation5 + $0x18] sm:$0xff]
        %v376 = vld [vmem:[#allocation5 + $0x20] sm:$0xf]
        %v377 = vld [vmem:[#allocation5 + $0x24] sm:$0xff]
        %v378 = vld [vmem:[#allocation5 + $0x2c] sm:$0xf]
        %v395 = vunpack.c.l.b16 %v355
        %v396 = vunpack.c.l.b16 %v356
        %v397 = vunpack.c.l.b16 %v357
        %v398 = vunpack.c.l.b16 %v358
        %v399 = vunpack.c.l.b16 %v359
        %v400 = vunpack.c.l.b16 %v360
        %v401 = vunpack.c.l.b16 %v361
        %v402 = vunpack.c.l.b16 %v362
        %v403 = vunpack.c.l.b16 %v363
        %v404 = vunpack.c.l.b16 %v364
        %v405 = vunpack.c.l.b16 %v365
        %v406 = vunpack.c.l.b16 %v366
        %v407 = vunpack.c.l.b16 %v367
        %v408 = vunpack.c.l.b16 %v368
        %v409 = vunpack.c.l.b16 %v369
        %v410 = vunpack.c.l.b16 %v370
        %v411 = vpack.c.b16 %v396, %v395
        %v412 = vpack.c.b16 %v398, %v397
        %v413 = vpack.c.b16 %v400, %v399
        %v414 = vpack.c.b16 %v402, %v401
        %v415 = vpack.c.b16 %v404, %v403
        %v416 = vpack.c.b16 %v406, %v405
        %v417 = vpack.c.b16 %v408, %v407
        %v418 = vpack.c.b16 %v410, %v409
        %v427 = vunpack.c.l.b16 %v371
        %v428 = vunpack.c.h.b16 %v371
        %v429 = vunpack.c.l.b16 %v372
        %v430 = vunpack.c.l.b16 %v373
        %v431 = vunpack.c.h.b16 %v373
        %v432 = vunpack.c.l.b16 %v374
        %v433 = vunpack.c.l.b16 %v375
        %v434 = vunpack.c.h.b16 %v375
        %v435 = vunpack.c.l.b16 %v376
        %v436 = vunpack.c.l.b16 %v377
        %v437 = vunpack.c.h.b16 %v377
        %v438 = vunpack.c.l.b16 %v378
        %v439 = vpack.c.b16 %v430, %v427
        %v440 = vpack.c.b16 %v431, %v428
        %v441 = vpack.c.b16 %v432, %v429
        %v442 = vpack.c.b16 %v436, %v433
        %v443 = vpack.c.b16 %v437, %v434
        %v444 = vpack.c.b16 %v438, %v435
        %vm451 = vcmask 261120
        %v453 = vsel %vm451, %v411, 0
        %v456 = vsel %vm451, %v412, 0
        %v459 = vsel %vm451, %v413, 0
        %v462 = vsel %vm451, %v414, 0
        %v465 = vsel %vm451, %v415, 0
        %v468 = vsel %vm451, %v416, 0
        %v471 = vsel %vm451, %v417, 0
        %v474 = vsel %vm451, %v418, 0
        %476 = vmatpush.bf16.msra.mxu0 0
        %477 = vmatpush.bf16.msra.mxu0 0
        %478 = vmatpush.bf16.msra.mxu0 0
        %479 = vmatpush.bf16.msra.mxu0 0
        %480 = vmatpush.bf16.msra.mxu0 0
        %481 = vmatpush.bf16.msra.mxu0 0
        %482 = vmatpush.bf16.msra.mxu0 %v442
        %483 = vmatpush.bf16.msra.mxu0 %v439
        %484 = vmatmul.bf16.gmra.mxu0 %v453
        %v485 = vpop.f32.mrf.mxu0
        %v486 = vadd.f32 0.0, %v485
        %v487 = vpop.f32.mrf.mxu0
        %v488 = vadd.f32 0.0, %v487
        %489 = vmatmul.bf16.gmra.mxu0 %v456
        %v490 = vpop.f32.mrf.mxu0
        %v491 = vadd.f32 0.0, %v490
        %v492 = vpop.f32.mrf.mxu0
        %v493 = vadd.f32 0.0, %v492
        %494 = vmatmul.bf16.gmra.mxu0 %v459
        %v495 = vpop.f32.mrf.mxu0
        %v496 = vadd.f32 0.0, %v495
        %v497 = vpop.f32.mrf.mxu0
        %v498 = vadd.f32 0.0, %v497
        %499 = vmatmul.bf16.gmra.mxu0 %v462
        %v500 = vpop.f32.mrf.mxu0
        %v501 = vadd.f32 0.0, %v500
        %v502 = vpop.f32.mrf.mxu0
        %v503 = vadd.f32 0.0, %v502
        %504 = vmatmul.bf16.gmra.mxu0 %v465
        %v505 = vpop.f32.mrf.mxu0
        %v506 = vadd.f32 0.0, %v505
        %v507 = vpop.f32.mrf.mxu0
        %v508 = vadd.f32 0.0, %v507
        %509 = vmatmul.bf16.gmra.mxu0 %v468
        %v510 = vpop.f32.mrf.mxu0
        %v511 = vadd.f32 0.0, %v510
        %v512 = vpop.f32.mrf.mxu0
        %v513 = vadd.f32 0.0, %v512
        %514 = vmatmul.bf16.gmra.mxu0 %v471
        %v515 = vpop.f32.mrf.mxu0
        %v516 = vadd.f32 0.0, %v515
        %v517 = vpop.f32.mrf.mxu0
        %v518 = vadd.f32 0.0, %v517
        %519 = vmatmul.bf16.gmra.mxu0 %v474
        %v520 = vpop.f32.mrf.mxu0
        %v521 = vadd.f32 0.0, %v520
        %v522 = vpop.f32.mrf.mxu0
        %v523 = vadd.f32 0.0, %v522
        %524 = vdwg.mxu0
        %525 = vmatpush.bf16.msra.mxu0 0
        %526 = vmatpush.bf16.msra.mxu0 0
        %527 = vmatpush.bf16.msra.mxu0 0
        %528 = vmatpush.bf16.msra.mxu0 0
        %529 = vmatpush.bf16.msra.mxu0 0
        %530 = vmatpush.bf16.msra.mxu0 0
        %531 = vmatpush.bf16.msra.mxu0 %v443
        %532 = vmatpush.bf16.msra.mxu0 %v440
        %533 = vmatmul.bf16.gmra.mxu0 %v453
        %v534 = vpop.f32.mrf.mxu0
        %v535 = vadd.f32 0.0, %v534
        %v536 = vpop.f32.mrf.mxu0
        %v537 = vadd.f32 0.0, %v536
        %538 = vmatmul.bf16.gmra.mxu0 %v456
        %v539 = vpop.f32.mrf.mxu0
        %v540 = vadd.f32 0.0, %v539
        %v541 = vpop.f32.mrf.mxu0
        %v542 = vadd.f32 0.0, %v541
        %543 = vmatmul.bf16.gmra.mxu0 %v459
        %v544 = vpop.f32.mrf.mxu0
        %v545 = vadd.f32 0.0, %v544
        %v546 = vpop.f32.mrf.mxu0
        %v547 = vadd.f32 0.0, %v546
        %548 = vmatmul.bf16.gmra.mxu0 %v462
        %v549 = vpop.f32.mrf.mxu0
        %v550 = vadd.f32 0.0, %v549
        %v551 = vpop.f32.mrf.mxu0
        %v552 = vadd.f32 0.0, %v551
        %553 = vmatmul.bf16.gmra.mxu0 %v465
        %v554 = vpop.f32.mrf.mxu0
        %v555 = vadd.f32 0.0, %v554
        %v556 = vpop.f32.mrf.mxu0
        %v557 = vadd.f32 0.0, %v556
        %558 = vmatmul.bf16.gmra.mxu0 %v468
        %v559 = vpop.f32.mrf.mxu0
        %v560 = vadd.f32 0.0, %v559
        %v561 = vpop.f32.mrf.mxu0
        %v562 = vadd.f32 0.0, %v561
        %563 = vmatmul.bf16.gmra.mxu0 %v471
        %v564 = vpop.f32.mrf.mxu0
        %v565 = vadd.f32 0.0, %v564
        %v566 = vpop.f32.mrf.mxu0
        %v567 = vadd.f32 0.0, %v566
        %568 = vmatmul.bf16.gmra.mxu0 %v474
        %v569 = vpop.f32.mrf.mxu0
        %v570 = vadd.f32 0.0, %v569
        %v571 = vpop.f32.mrf.mxu0
        %v572 = vadd.f32 0.0, %v571
        %573 = vdwg.mxu0
        %574 = vmatpush.bf16.msra.mxu0 0
        %575 = vmatpush.bf16.msra.mxu0 0
        %576 = vmatpush.bf16.msra.mxu0 0
        %577 = vmatpush.bf16.msra.mxu0 0
        %578 = vmatpush.bf16.msra.mxu0 0
        %579 = vmatpush.bf16.msra.mxu0 0
        %580 = vmatpush.bf16.msra.mxu0 %v444
        %581 = vmatpush.bf16.msra.mxu0 %v441
        %582 = vmatmul.bf16.gmra.mxu0 %v453
        %v583 = vpop.f32.mrf.mxu0
        %v584 = vadd.f32 0.0, %v583
        %v585 = vpop.f32.mrf.mxu0
        %v586 = vadd.f32 0.0, %v585
        %587 = vmatmul.bf16.gmra.mxu0 %v456
        %v588 = vpop.f32.mrf.mxu0
        %v589 = vadd.f32 0.0, %v588
        %v590 = vpop.f32.mrf.mxu0
        %v591 = vadd.f32 0.0, %v590
        %592 = vmatmul.bf16.gmra.mxu0 %v459
        %v593 = vpop.f32.mrf.mxu0
        %v594 = vadd.f32 0.0, %v593
        %v595 = vpop.f32.mrf.mxu0
        %v596 = vadd.f32 0.0, %v595
        %597 = vmatmul.bf16.gmra.mxu0 %v462
        %v598 = vpop.f32.mrf.mxu0
        %v599 = vadd.f32 0.0, %v598
        %v600 = vpop.f32.mrf.mxu0
        %v601 = vadd.f32 0.0, %v600
        %602 = vmatmul.bf16.gmra.mxu0 %v465
        %v603 = vpop.f32.mrf.mxu0
        %v604 = vadd.f32 0.0, %v603
        %v605 = vpop.f32.mrf.mxu0
        %v606 = vadd.f32 0.0, %v605
        %607 = vmatmul.bf16.gmra.mxu0 %v468
        %v608 = vpop.f32.mrf.mxu0
        %v609 = vadd.f32 0.0, %v608
        %v610 = vpop.f32.mrf.mxu0
        %v611 = vadd.f32 0.0, %v610
        %612 = vmatmul.bf16.gmra.mxu0 %v471
        %v613 = vpop.f32.mrf.mxu0
        %v614 = vadd.f32 0.0, %v613
        %v615 = vpop.f32.mrf.mxu0
        %v616 = vadd.f32 0.0, %v615
        %617 = vmatmul.bf16.gmra.mxu0 %v474
        %v618 = vpop.f32.mrf.mxu0
        %v619 = vadd.f32 0.0, %v618
        %v620 = vpop.f32.mrf.mxu0
        %v621 = vadd.f32 0.0, %v620
        %622 = vdwg.mxu0
        %s623 = scalar_lea.vmem [#allocation5], 48
        %v624 = vld [vmem:[%s623] sm:$0xff]
        %v625 = vld [vmem:[%s623 + $0x8] sm:$0xf]
        %v626 = vld [vmem:[%s623 + $0xc] sm:$0xff]
        %v627 = vld [vmem:[%s623 + $0x14] sm:$0xf]
        %v628 = vld [vmem:[%s623 + $0x18] sm:$0xff]
        %v629 = vld [vmem:[%s623 + $0x20] sm:$0xf]
        %v630 = vld [vmem:[%s623 + $0x24] sm:$0xff]
        %v631 = vld [vmem:[%s623 + $0x2c] sm:$0xf]
        %v640 = vunpack.c.l.b16 %v624
        %v641 = vunpack.c.h.b16 %v624
        %v642 = vunpack.c.l.b16 %v625
        %v643 = vunpack.c.l.b16 %v626
        %v644 = vunpack.c.h.b16 %v626
        %v645 = vunpack.c.l.b16 %v627
        %v646 = vunpack.c.l.b16 %v628
        %v647 = vunpack.c.h.b16 %v628
        %v648 = vunpack.c.l.b16 %v629
        %v649 = vunpack.c.l.b16 %v630
        %v650 = vunpack.c.h.b16 %v630
        %v651 = vunpack.c.l.b16 %v631
        %v652 = vpack.c.b16 %v643, %v640
        %v653 = vpack.c.b16 %v644, %v641
        %v654 = vpack.c.b16 %v645, %v642
        %v655 = vpack.c.b16 %v649, %v646
        %v656 = vpack.c.b16 %v650, %v647
        %v657 = vpack.c.b16 %v651, %v648
        %664 = vmatpush.bf16.msra.mxu0 0
        %665 = vmatpush.bf16.msra.mxu0 0
        %666 = vmatpush.bf16.msra.mxu0 0
        %667 = vmatpush.bf16.msra.mxu0 0
        %668 = vmatpush.bf16.msra.mxu0 0
        %669 = vmatpush.bf16.msra.mxu0 0
        %670 = vmatpush.bf16.msra.mxu0 %v655
        %671 = vmatpush.bf16.msra.mxu0 %v652
        %672 = vmatmul.bf16.gmra.mxu0 %v453
        %v673 = vpop.f32.mrf.mxu0
        %v674 = vadd.f32 0.0, %v673
        %v675 = vpop.f32.mrf.mxu0
        %v676 = vadd.f32 0.0, %v675
        %677 = vmatmul.bf16.gmra.mxu0 %v456
        %v678 = vpop.f32.mrf.mxu0
        %v679 = vadd.f32 0.0, %v678
        %v680 = vpop.f32.mrf.mxu0
        %v681 = vadd.f32 0.0, %v680
        %682 = vmatmul.bf16.gmra.mxu0 %v459
        %v683 = vpop.f32.mrf.mxu0
        %v684 = vadd.f32 0.0, %v683
        %v685 = vpop.f32.mrf.mxu0
        %v686 = vadd.f32 0.0, %v685
        %687 = vmatmul.bf16.gmra.mxu0 %v462
        %v688 = vpop.f32.mrf.mxu0
        %v689 = vadd.f32 0.0, %v688
        %v690 = vpop.f32.mrf.mxu0
        %v691 = vadd.f32 0.0, %v690
        %692 = vmatmul.bf16.gmra.mxu0 %v465
        %v693 = vpop.f32.mrf.mxu0
        %v694 = vadd.f32 0.0, %v693
        %v695 = vpop.f32.mrf.mxu0
        %v696 = vadd.f32 0.0, %v695
        %697 = vmatmul.bf16.gmra.mxu0 %v468
        %v698 = vpop.f32.mrf.mxu0
        %v699 = vadd.f32 0.0, %v698
        %v700 = vpop.f32.mrf.mxu0
        %v701 = vadd.f32 0.0, %v700
        %702 = vmatmul.bf16.gmra.mxu0 %v471
        %v703 = vpop.f32.mrf.mxu0
        %v704 = vadd.f32 0.0, %v703
        %v705 = vpop.f32.mrf.mxu0
        %v706 = vadd.f32 0.0, %v705
        %707 = vmatmul.bf16.gmra.mxu0 %v474
        %v708 = vpop.f32.mrf.mxu0
        %v709 = vadd.f32 0.0, %v708
        %v710 = vpop.f32.mrf.mxu0
        %v711 = vadd.f32 0.0, %v710
        %712 = vdwg.mxu0
        %713 = vmatpush.bf16.msra.mxu0 0
        %714 = vmatpush.bf16.msra.mxu0 0
        %715 = vmatpush.bf16.msra.mxu0 0
        %716 = vmatpush.bf16.msra.mxu0 0
        %717 = vmatpush.bf16.msra.mxu0 0
        %718 = vmatpush.bf16.msra.mxu0 0
        %719 = vmatpush.bf16.msra.mxu0 %v656
        %720 = vmatpush.bf16.msra.mxu0 %v653
        %721 = vmatmul.bf16.gmra.mxu0 %v453
        %v722 = vpop.f32.mrf.mxu0
        %v723 = vadd.f32 0.0, %v722
        %v724 = vpop.f32.mrf.mxu0
        %v725 = vadd.f32 0.0, %v724
        %726 = vmatmul.bf16.gmra.mxu0 %v456
        %v727 = vpop.f32.mrf.mxu0
        %v728 = vadd.f32 0.0, %v727
        %v729 = vpop.f32.mrf.mxu0
        %v730 = vadd.f32 0.0, %v729
        %731 = vmatmul.bf16.gmra.mxu0 %v459
        %v732 = vpop.f32.mrf.mxu0
        %v733 = vadd.f32 0.0, %v732
        %v734 = vpop.f32.mrf.mxu0
        %v735 = vadd.f32 0.0, %v734
        %736 = vmatmul.bf16.gmra.mxu0 %v462
        %v737 = vpop.f32.mrf.mxu0
        %v738 = vadd.f32 0.0, %v737
        %v739 = vpop.f32.mrf.mxu0
        %v740 = vadd.f32 0.0, %v739
        %741 = vmatmul.bf16.gmra.mxu0 %v465
        %v742 = vpop.f32.mrf.mxu0
        %v743 = vadd.f32 0.0, %v742
        %v744 = vpop.f32.mrf.mxu0
        %v745 = vadd.f32 0.0, %v744
        %746 = vmatmul.bf16.gmra.mxu0 %v468
        %v747 = vpop.f32.mrf.mxu0
        %v748 = vadd.f32 0.0, %v747
        %v749 = vpop.f32.mrf.mxu0
        %v750 = vadd.f32 0.0, %v749
        %751 = vmatmul.bf16.gmra.mxu0 %v471
        %v752 = vpop.f32.mrf.mxu0
        %v753 = vadd.f32 0.0, %v752
        %v754 = vpop.f32.mrf.mxu0
        %v755 = vadd.f32 0.0, %v754
        %756 = vmatmul.bf16.gmra.mxu0 %v474
        %v757 = vpop.f32.mrf.mxu0
        %v758 = vadd.f32 0.0, %v757
        %v759 = vpop.f32.mrf.mxu0
        %v760 = vadd.f32 0.0, %v759
        %761 = vdwg.mxu0
        %762 = vmatpush.bf16.msra.mxu0 0
        %763 = vmatpush.bf16.msra.mxu0 0
        %764 = vmatpush.bf16.msra.mxu0 0
        %765 = vmatpush.bf16.msra.mxu0 0
        %766 = vmatpush.bf16.msra.mxu0 0
        %767 = vmatpush.bf16.msra.mxu0 0
        %768 = vmatpush.bf16.msra.mxu0 %v657
        %769 = vmatpush.bf16.msra.mxu0 %v654
        %770 = vmatmul.bf16.gmra.mxu0 %v453
        %v771 = vpop.f32.mrf.mxu0
        %v772 = vadd.f32 0.0, %v771
        %v773 = vpop.f32.mrf.mxu0
        %v774 = vadd.f32 0.0, %v773
        %775 = vmatmul.bf16.gmra.mxu0 %v456
        %v776 = vpop.f32.mrf.mxu0
        %v777 = vadd.f32 0.0, %v776
        %v778 = vpop.f32.mrf.mxu0
        %v779 = vadd.f32 0.0, %v778
        %780 = vmatmul.bf16.gmra.mxu0 %v459
        %v781 = vpop.f32.mrf.mxu0
        %v782 = vadd.f32 0.0, %v781
        %v783 = vpop.f32.mrf.mxu0
        %v784 = vadd.f32 0.0, %v783
        %785 = vmatmul.bf16.gmra.mxu0 %v462
        %v786 = vpop.f32.mrf.mxu0
        %v787 = vadd.f32 0.0, %v786
        %v788 = vpop.f32.mrf.mxu0
        %v789 = vadd.f32 0.0, %v788
        %790 = vmatmul.bf16.gmra.mxu0 %v465
        %v791 = vpop.f32.mrf.mxu0
        %v792 = vadd.f32 0.0, %v791
        %v793 = vpop.f32.mrf.mxu0
        %v794 = vadd.f32 0.0, %v793
        %795 = vmatmul.bf16.gmra.mxu0 %v468
        %v796 = vpop.f32.mrf.mxu0
        %v797 = vadd.f32 0.0, %v796
        %v798 = vpop.f32.mrf.mxu0
        %v799 = vadd.f32 0.0, %v798
        %800 = vmatmul.bf16.gmra.mxu0 %v471
        %v801 = vpop.f32.mrf.mxu0
        %v802 = vadd.f32 0.0, %v801
        %v803 = vpop.f32.mrf.mxu0
        %v804 = vadd.f32 0.0, %v803
        %805 = vmatmul.bf16.gmra.mxu0 %v474
        %v806 = vpop.f32.mrf.mxu0
        %v807 = vadd.f32 0.0, %v806
        %v808 = vpop.f32.mrf.mxu0
        %v809 = vadd.f32 0.0, %v808
        %810 = vdwg.mxu0
        %v811 = vrot.slane %v674, 1
        %v812 = vrot.slane %v723, 1
        %v813 = vrot.slane %v772, 1
        %v814 = vrot.slane %v676, 1
        %v815 = vrot.slane %v725, 1
        %v816 = vrot.slane %v774, 1
        %v817 = vrot.slane %v679, 1
        %v818 = vrot.slane %v728, 1
        %v819 = vrot.slane %v777, 1
        %v820 = vrot.slane %v681, 1
        %v821 = vrot.slane %v730, 1
        %v822 = vrot.slane %v779, 1
        %v823 = vrot.slane %v684, 1
        %v824 = vrot.slane %v733, 1
        %v825 = vrot.slane %v782, 1
        %v826 = vrot.slane %v686, 1
        %v827 = vrot.slane %v735, 1
        %v828 = vrot.slane %v784, 1
        %v829 = vrot.slane %v689, 1
        %v830 = vrot.slane %v738, 1
        %v831 = vrot.slane %v787, 1
        %v832 = vrot.slane %v691, 1
        %v833 = vrot.slane %v740, 1
        %v834 = vrot.slane %v789, 1
        %v835 = vrot.slane %v694, 1
        %v836 = vrot.slane %v743, 1
        %v837 = vrot.slane %v792, 1
        %v838 = vrot.slane %v696, 1
        %v839 = vrot.slane %v745, 1
        %v840 = vrot.slane %v794, 1
        %v841 = vrot.slane %v699, 1
        %v842 = vrot.slane %v748, 1
        %v843 = vrot.slane %v797, 1
        %v844 = vrot.slane %v701, 1
        %v845 = vrot.slane %v750, 1
        %v846 = vrot.slane %v799, 1
        %v847 = vrot.slane %v704, 1
        %v848 = vrot.slane %v753, 1
        %v849 = vrot.slane %v802, 1
        %v850 = vrot.slane %v706, 1
        %v851 = vrot.slane %v755, 1
        %v852 = vrot.slane %v804, 1
        %v853 = vrot.slane %v709, 1
        %v854 = vrot.slane %v758, 1
        %v855 = vrot.slane %v807, 1
        %v856 = vrot.slane %v711, 1
        %v857 = vrot.slane %v760, 1
        %v858 = vrot.slane %v809, 1
        %v859 = vlaneseq
        %v860 = vshrl.u32 %v859, 7
        %vm861 = vcmp.lt.s32.totalorder %v860, 7
        %v862 = vsel %vm861, %v853, %v856
        %v863 = vsel %vm861, %v854, %v857
        %v864 = vsel %vm861, %v855, %v858
        %v865 = vsel %vm861, %v850, %v853
        %v866 = vsel %vm861, %v851, %v854
        %v867 = vsel %vm861, %v852, %v855
        %v868 = vsel %vm861, %v847, %v850
        %v869 = vsel %vm861, %v848, %v851
        %v870 = vsel %vm861, %v849, %v852
        %v871 = vsel %vm861, %v844, %v847
        %v872 = vsel %vm861, %v845, %v848
        %v873 = vsel %vm861, %v846, %v849
        %v874 = vsel %vm861, %v841, %v844
        %v875 = vsel %vm861, %v842, %v845
        %v876 = vsel %vm861, %v843, %v846
        %v877 = vsel %vm861, %v838, %v841
        %v878 = vsel %vm861, %v839, %v842
        %v879 = vsel %vm861, %v840, %v843
        %v880 = vsel %vm861, %v835, %v838
        %v881 = vsel %vm861, %v836, %v839
        %v882 = vsel %vm861, %v837, %v840
        %v883 = vsel %vm861, %v832, %v835
        %v884 = vsel %vm861, %v833, %v836
        %v885 = vsel %vm861, %v834, %v837
        %v886 = vsel %vm861, %v829, %v832
        %v887 = vsel %vm861, %v830, %v833
        %v888 = vsel %vm861, %v831, %v834
        %v889 = vsel %vm861, %v826, %v829
        %v890 = vsel %vm861, %v827, %v830
        %v891 = vsel %vm861, %v828, %v831
        %v892 = vsel %vm861, %v823, %v826
        %v893 = vsel %vm861, %v824, %v827
        %v894 = vsel %vm861, %v825, %v828
        %v895 = vsel %vm861, %v820, %v823
        %v896 = vsel %vm861, %v821, %v824
        %v897 = vsel %vm861, %v822, %v825
        %v898 = vsel %vm861, %v817, %v820
        %v899 = vsel %vm861, %v818, %v821
        %v900 = vsel %vm861, %v819, %v822
        %v901 = vsel %vm861, %v814, %v817
        %v902 = vsel %vm861, %v815, %v818
        %v903 = vsel %vm861, %v816, %v819
        %v904 = vsel %vm861, %v811, %v814
        %v905 = vsel %vm861, %v812, %v815
        %v906 = vsel %vm861, %v813, %v816
        %v907 = vsel %vm861, %v856, %v811
        %v908 = vsel %vm861, %v857, %v812
        %v909 = vsel %vm861, %v858, %v813
        %s910 = scalar_lea.vmem [#allocation5], 96
        %v911 = vld [vmem:[%s910 + $0x4] sm:$0xff]
        %v912 = vld [vmem:[%s910 + $0x10] sm:$0xff]
        %v913 = vld [vmem:[%s910 + $0x1c] sm:$0xff]
        %v914 = vld [vmem:[%s910 + $0x28] sm:$0xff]
        %v919 = vunpack.c.l.b16 %v911
        %v920 = vunpack.c.h.b16 %v911
        %v921 = vunpack.c.l.b16 %v912
        %v922 = vunpack.c.h.b16 %v912
        %v923 = vunpack.c.l.b16 %v913
        %v924 = vunpack.c.h.b16 %v913
        %v925 = vunpack.c.l.b16 %v914
        %v926 = vunpack.c.h.b16 %v914
        %v927 = vpack.c.b16 %v921, %v919
        %v928 = vpack.c.b16 %v922, %v920
        %v929 = vpack.c.b16 %v925, %v923
        %v930 = vpack.c.b16 %v926, %v924
        %935 = vmatpush.bf16.msra.mxu0 0
        %936 = vmatpush.bf16.msra.mxu0 0
        %937 = vmatpush.bf16.msra.mxu0 0
        %938 = vmatpush.bf16.msra.mxu0 0
        %939 = vmatpush.bf16.msra.mxu0 0
        %940 = vmatpush.bf16.msra.mxu0 0
        %941 = vmatpush.bf16.msra.mxu0 %v929
        %942 = vmatpush.bf16.msra.mxu0 %v927
        %943 = vmatmul.bf16.gmra.mxu0 %v453
        %v944 = vpop.f32.mrf.mxu0
        %v945 = vadd.f32 0.0, %v944
        %v946 = vpop.f32.mrf.mxu0
        %v947 = vadd.f32 0.0, %v946
        %948 = vmatmul.bf16.gmra.mxu0 %v456
        %v949 = vpop.f32.mrf.mxu0
        %v950 = vadd.f32 0.0, %v949
        %v951 = vpop.f32.mrf.mxu0
        %v952 = vadd.f32 0.0, %v951
        %953 = vmatmul.bf16.gmra.mxu0 %v459
        %v954 = vpop.f32.mrf.mxu0
        %v955 = vadd.f32 0.0, %v954
        %v956 = vpop.f32.mrf.mxu0
        %v957 = vadd.f32 0.0, %v956
        %958 = vmatmul.bf16.gmra.mxu0 %v462
        %v959 = vpop.f32.mrf.mxu0
        %v960 = vadd.f32 0.0, %v959
        %v961 = vpop.f32.mrf.mxu0
        %v962 = vadd.f32 0.0, %v961
        %963 = vmatmul.bf16.gmra.mxu0 %v465
        %v964 = vpop.f32.mrf.mxu0
        %v965 = vadd.f32 0.0, %v964
        %v966 = vpop.f32.mrf.mxu0
        %v967 = vadd.f32 0.0, %v966
        %968 = vmatmul.bf16.gmra.mxu0 %v468
        %v969 = vpop.f32.mrf.mxu0
        %v970 = vadd.f32 0.0, %v969
        %v971 = vpop.f32.mrf.mxu0
        %v972 = vadd.f32 0.0, %v971
        %973 = vmatmul.bf16.gmra.mxu0 %v471
        %v974 = vpop.f32.mrf.mxu0
        %v975 = vadd.f32 0.0, %v974
        %v976 = vpop.f32.mrf.mxu0
        %v977 = vadd.f32 0.0, %v976
        %978 = vmatmul.bf16.gmra.mxu0 %v474
        %v979 = vpop.f32.mrf.mxu0
        %v980 = vadd.f32 0.0, %v979
        %v981 = vpop.f32.mrf.mxu0
        %v982 = vadd.f32 0.0, %v981
        %983 = vdwg.mxu0
        %984 = vmatpush.bf16.msra.mxu0 0
        %985 = vmatpush.bf16.msra.mxu0 0
        %986 = vmatpush.bf16.msra.mxu0 0
        %987 = vmatpush.bf16.msra.mxu0 0
        %988 = vmatpush.bf16.msra.mxu0 0
        %989 = vmatpush.bf16.msra.mxu0 0
        %990 = vmatpush.bf16.msra.mxu0 %v930
        %991 = vmatpush.bf16.msra.mxu0 %v928
        %992 = vmatmul.bf16.gmra.mxu0 %v453
        %v993 = vpop.f32.mrf.mxu0
        %v994 = vadd.f32 0.0, %v993
        %v995 = vpop.f32.mrf.mxu0
        %v996 = vadd.f32 0.0, %v995
        %997 = vmatmul.bf16.gmra.mxu0 %v456
        %v998 = vpop.f32.mrf.mxu0
        %v999 = vadd.f32 0.0, %v998
        %v1000 = vpop.f32.mrf.mxu0
        %v1001 = vadd.f32 0.0, %v1000
        %1002 = vmatmul.bf16.gmra.mxu0 %v459
        %v1003 = vpop.f32.mrf.mxu0
        %v1004 = vadd.f32 0.0, %v1003
        %v1005 = vpop.f32.mrf.mxu0
        %v1006 = vadd.f32 0.0, %v1005
        %1007 = vmatmul.bf16.gmra.mxu0 %v462
        %v1008 = vpop.f32.mrf.mxu0
        %v1009 = vadd.f32 0.0, %v1008
        %v1010 = vpop.f32.mrf.mxu0
        %v1011 = vadd.f32 0.0, %v1010
        %1012 = vmatmul.bf16.gmra.mxu0 %v465
        %v1013 = vpop.f32.mrf.mxu0
        %v1014 = vadd.f32 0.0, %v1013
        %v1015 = vpop.f32.mrf.mxu0
        %v1016 = vadd.f32 0.0, %v1015
        %1017 = vmatmul.bf16.gmra.mxu0 %v468
        %v1018 = vpop.f32.mrf.mxu0
        %v1019 = vadd.f32 0.0, %v1018
        %v1020 = vpop.f32.mrf.mxu0
        %v1021 = vadd.f32 0.0, %v1020
        %1022 = vmatmul.bf16.gmra.mxu0 %v471
        %v1023 = vpop.f32.mrf.mxu0
        %v1024 = vadd.f32 0.0, %v1023
        %v1025 = vpop.f32.mrf.mxu0
        %v1026 = vadd.f32 0.0, %v1025
        %1027 = vmatmul.bf16.gmra.mxu0 %v474
        %v1028 = vpop.f32.mrf.mxu0
        %v1029 = vadd.f32 0.0, %v1028
        %v1030 = vpop.f32.mrf.mxu0
        %v1031 = vadd.f32 0.0, %v1030
        %1032 = vdwg.mxu0
        %v1033 = vrot.slane %v945, 2
        %v1034 = vrot.slane %v994, 2
        %v1035 = vrot.slane %v947, 2
        %v1036 = vrot.slane %v996, 2
        %v1037 = vrot.slane %v950, 2
        %v1038 = vrot.slane %v999, 2
        %v1039 = vrot.slane %v952, 2
        %v1040 = vrot.slane %v1001, 2
        %v1041 = vrot.slane %v955, 2
        %v1042 = vrot.slane %v1004, 2
        %v1043 = vrot.slane %v957, 2
        %v1044 = vrot.slane %v1006, 2
        %v1045 = vrot.slane %v960, 2
        %v1046 = vrot.slane %v1009, 2
        %v1047 = vrot.slane %v962, 2
        %v1048 = vrot.slane %v1011, 2
        %v1049 = vrot.slane %v965, 2
        %v1050 = vrot.slane %v1014, 2
        %v1051 = vrot.slane %v967, 2
        %v1052 = vrot.slane %v1016, 2
        %v1053 = vrot.slane %v970, 2
        %v1054 = vrot.slane %v1019, 2
        %v1055 = vrot.slane %v972, 2
        %v1056 = vrot.slane %v1021, 2
        %v1057 = vrot.slane %v975, 2
        %v1058 = vrot.slane %v1024, 2
        %v1059 = vrot.slane %v977, 2
        %v1060 = vrot.slane %v1026, 2
        %v1061 = vrot.slane %v980, 2
        %v1062 = vrot.slane %v1029, 2
        %v1063 = vrot.slane %v982, 2
        %v1064 = vrot.slane %v1031, 2
        %vm1065 = vcmp.lt.s32.totalorder %v860, 6
        %v1066 = vsel %vm1065, %v1061, %v1063
        %v1067 = vsel %vm1065, %v1062, %v1064
        %v1068 = vsel %vm1065, %v1059, %v1061
        %v1069 = vsel %vm1065, %v1060, %v1062
        %v1070 = vsel %vm1065, %v1057, %v1059
        %v1071 = vsel %vm1065, %v1058, %v1060
        %v1072 = vsel %vm1065, %v1055, %v1057
        %v1073 = vsel %vm1065, %v1056, %v1058
        %v1074 = vsel %vm1065, %v1053, %v1055
        %v1075 = vsel %vm1065, %v1054, %v1056
        %v1076 = vsel %vm1065, %v1051, %v1053
        %v1077 = vsel %vm1065, %v1052, %v1054
        %v1078 = vsel %vm1065, %v1049, %v1051
        %v1079 = vsel %vm1065, %v1050, %v1052
        %v1080 = vsel %vm1065, %v1047, %v1049
        %v1081 = vsel %vm1065, %v1048, %v1050
        %v1082 = vsel %vm1065, %v1045, %v1047
        %v1083 = vsel %vm1065, %v1046, %v1048
        %v1084 = vsel %vm1065, %v1043, %v1045
        %v1085 = vsel %vm1065, %v1044, %v1046
        %v1086 = vsel %vm1065, %v1041, %v1043
        %v1087 = vsel %vm1065, %v1042, %v1044
        %v1088 = vsel %vm1065, %v1039, %v1041
        %v1089 = vsel %vm1065, %v1040, %v1042
        %v1090 = vsel %vm1065, %v1037, %v1039
        %v1091 = vsel %vm1065, %v1038, %v1040
        %v1092 = vsel %vm1065, %v1035, %v1037
        %v1093 = vsel %vm1065, %v1036, %v1038
        %v1094 = vsel %vm1065, %v1033, %v1035
        %v1095 = vsel %vm1065, %v1034, %v1036
        %v1096 = vsel %vm1065, %v1063, %v1033
        %v1097 = vsel %vm1065, %v1064, %v1034
        %s1098 = scalar_lea.vmem [#allocation5], 144
        %v1099 = vld [vmem:[%s1098 + $0x8] sm:$0xf]
        %v1100 = vld [vmem:[%s1098 + $0x14] sm:$0xf]
        %v1101 = vld [vmem:[%s1098 + $0x20] sm:$0xf]
        %v1102 = vld [vmem:[%s1098 + $0x2c] sm:$0xf]
        %v1107 = vunpack.c.l.b16 %v1099
        %v1108 = vunpack.c.l.b16 %v1100
        %v1109 = vunpack.c.l.b16 %v1101
        %v1110 = vunpack.c.l.b16 %v1102
        %v1111 = vpack.c.b16 %v1108, %v1107
        %v1112 = vpack.c.b16 %v1110, %v1109
        %1115 = vmatpush.bf16.msra.mxu0 0
        %1116 = vmatpush.bf16.msra.mxu0 0
        %1117 = vmatpush.bf16.msra.mxu0 0
        %1118 = vmatpush.bf16.msra.mxu0 0
        %1119 = vmatpush.bf16.msra.mxu0 0
        %1120 = vmatpush.bf16.msra.mxu0 0
        %1121 = vmatpush.bf16.msra.mxu0 %v1112
        %1122 = vmatpush.bf16.msra.mxu0 %v1111
        %1123 = vmatmul.bf16.gmra.mxu0 %v453
        %v1124 = vpop.f32.mrf.mxu0
        %v1125 = vadd.f32 0.0, %v1124
        %v1126 = vpop.f32.mrf.mxu0
        %v1127 = vadd.f32 0.0, %v1126
        %1128 = vmatmul.bf16.gmra.mxu0 %v456
        %v1129 = vpop.f32.mrf.mxu0
        %v1130 = vadd.f32 0.0, %v1129
        %v1131 = vpop.f32.mrf.mxu0
        %v1132 = vadd.f32 0.0, %v1131
        %1133 = vmatmul.bf16.gmra.mxu0 %v459
        %v1134 = vpop.f32.mrf.mxu0
        %v1135 = vadd.f32 0.0, %v1134
        %v1136 = vpop.f32.mrf.mxu0
        %v1137 = vadd.f32 0.0, %v1136
        %1138 = vmatmul.bf16.gmra.mxu0 %v462
        %v1139 = vpop.f32.mrf.mxu0
        %v1140 = vadd.f32 0.0, %v1139
        %v1141 = vpop.f32.mrf.mxu0
        %v1142 = vadd.f32 0.0, %v1141
        %1143 = vmatmul.bf16.gmra.mxu0 %v465
        %v1144 = vpop.f32.mrf.mxu0
        %v1145 = vadd.f32 0.0, %v1144
        %v1146 = vpop.f32.mrf.mxu0
        %v1147 = vadd.f32 0.0, %v1146
        %1148 = vmatmul.bf16.gmra.mxu0 %v468
        %v1149 = vpop.f32.mrf.mxu0
        %v1150 = vadd.f32 0.0, %v1149
        %v1151 = vpop.f32.mrf.mxu0
        %v1152 = vadd.f32 0.0, %v1151
        %1153 = vmatmul.bf16.gmra.mxu0 %v471
        %v1154 = vpop.f32.mrf.mxu0
        %v1155 = vadd.f32 0.0, %v1154
        %v1156 = vpop.f32.mrf.mxu0
        %v1157 = vadd.f32 0.0, %v1156
        %1158 = vmatmul.bf16.gmra.mxu0 %v474
        %v1159 = vpop.f32.mrf.mxu0
        %v1160 = vadd.f32 0.0, %v1159
        %v1161 = vpop.f32.mrf.mxu0
        %v1162 = vadd.f32 0.0, %v1161
        %1163 = vdwg.mxu0
        %v1164 = vrot.slane %v1125, 3
        %v1165 = vrot.slane %v1127, 3
        %v1166 = vrot.slane %v1130, 3
        %v1167 = vrot.slane %v1132, 3
        %v1168 = vrot.slane %v1135, 3
        %v1169 = vrot.slane %v1137, 3
        %v1170 = vrot.slane %v1140, 3
        %v1171 = vrot.slane %v1142, 3
        %v1172 = vrot.slane %v1145, 3
        %v1173 = vrot.slane %v1147, 3
        %v1174 = vrot.slane %v1150, 3
        %v1175 = vrot.slane %v1152, 3
        %v1176 = vrot.slane %v1155, 3
        %v1177 = vrot.slane %v1157, 3
        %v1178 = vrot.slane %v1160, 3
        %v1179 = vrot.slane %v1162, 3
        %vm1180 = vcmp.lt.s32.totalorder %v860, 5
        %v1181 = vsel %vm1180, %v1178, %v1179
        %v1182 = vsel %vm1180, %v1177, %v1178
        %v1183 = vsel %vm1180, %v1176, %v1177
        %v1184 = vsel %vm1180, %v1175, %v1176
        %v1185 = vsel %vm1180, %v1174, %v1175
        %v1186 = vsel %vm1180, %v1173, %v1174
        %v1187 = vsel %vm1180, %v1172, %v1173
        %v1188 = vsel %vm1180, %v1171, %v1172
        %v1189 = vsel %vm1180, %v1170, %v1171
        %v1190 = vsel %vm1180, %v1169, %v1170
        %v1191 = vsel %vm1180, %v1168, %v1169
        %v1192 = vsel %vm1180, %v1167, %v1168
        %v1193 = vsel %vm1180, %v1166, %v1167
        %v1194 = vsel %vm1180, %v1165, %v1166
        %v1195 = vsel %vm1180, %v1164, %v1165
        %v1196 = vsel %vm1180, %v1179, %v1164
        %v1197 = vadd.f32 %v486, %v904
        %v1198 = vadd.f32 %v488, %v901
        %v1199 = vadd.f32 %v491, %v898
        %v1200 = vadd.f32 %v493, %v895
        %v1201 = vadd.f32 %v496, %v892
        %v1202 = vadd.f32 %v498, %v889
        %v1203 = vadd.f32 %v501, %v886
        %v1204 = vadd.f32 %v503, %v883
        %v1205 = vadd.f32 %v506, %v880
        %v1206 = vadd.f32 %v508, %v877
        %v1207 = vadd.f32 %v511, %v874
        %v1208 = vadd.f32 %v513, %v871
        %v1209 = vadd.f32 %v516, %v868
        %v1210 = vadd.f32 %v518, %v865
        %v1211 = vadd.f32 %v521, %v862
        %v1212 = vadd.f32 %v523, %v907
        %v1213 = vld [vmem:[#allocation7] sm:$0x1]
        %v1215 = vperm.slane %v1213, 0
        %v1217 = vadd.f32 %v1197, %v1215
        %v1218 = vadd.f32 %v1198, %v1215
        %v1219 = vadd.f32 %v1199, %v1215
        %v1220 = vadd.f32 %v1200, %v1215
        %v1221 = vadd.f32 %v1201, %v1215
        %v1222 = vadd.f32 %v1202, %v1215
        %v1223 = vadd.f32 %v1203, %v1215
        %v1224 = vadd.f32 %v1204, %v1215
        %v1225 = vadd.f32 %v1205, %v1215
        %v1226 = vadd.f32 %v1206, %v1215
        %v1227 = vadd.f32 %v1207, %v1215
        %v1228 = vadd.f32 %v1208, %v1215
        %v1229 = vadd.f32 %v1209, %v1215
        %v1230 = vadd.f32 %v1210, %v1215
        %v1231 = vadd.f32 %v1211, %v1215
        %v1232 = vadd.f32 %v1212, %v1215
        %v1233 = vmul.f32 %v1217, 0.1
        %v1234 = vmul.f32 %v1218, 0.1
        %v1235 = vmul.f32 %v1219, 0.1
        %v1236 = vmul.f32 %v1220, 0.1
        %v1237 = vmul.f32 %v1221, 0.1
        %v1238 = vmul.f32 %v1222, 0.1
        %v1239 = vmul.f32 %v1223, 0.1
        %v1240 = vmul.f32 %v1224, 0.1
        %v1241 = vmul.f32 %v1225, 0.1
        %v1242 = vmul.f32 %v1226, 0.1
        %v1243 = vmul.f32 %v1227, 0.1
        %v1244 = vmul.f32 %v1228, 0.1
        %v1245 = vmul.f32 %v1229, 0.1
        %v1246 = vmul.f32 %v1230, 0.1
        %v1247 = vmul.f32 %v1231, 0.1
        %v1248 = vmul.f32 %v1232, 0.1
        %v1249 = vmax.f32 %v1217, %v1233
        %v1250 = vmax.f32 %v1218, %v1234
        %v1251 = vmax.f32 %v1219, %v1235
        %v1252 = vmax.f32 %v1220, %v1236
        %v1253 = vmax.f32 %v1221, %v1237
        %v1254 = vmax.f32 %v1222, %v1238
        %v1255 = vmax.f32 %v1223, %v1239
        %v1256 = vmax.f32 %v1224, %v1240
        %v1257 = vmax.f32 %v1225, %v1241
        %v1258 = vmax.f32 %v1226, %v1242
        %v1259 = vmax.f32 %v1227, %v1243
        %v1260 = vmax.f32 %v1228, %v1244
        %v1261 = vmax.f32 %v1229, %v1245
        %v1262 = vmax.f32 %v1230, %v1246
        %v1263 = vmax.f32 %v1231, %v1247
        %v1264 = vmax.f32 %v1232, %v1248
        %v1265 = vld [vmem:[#allocation8] sm:$0xff]
        %v1266 = vld [vmem:[#allocation8 + $0x18] sm:$0xff]
        %v1267 = vadd.f32 %v1249, %v1265
        %v1268 = vadd.f32 %v1250, %v1266
        %v1269 = vadd.f32 %v1251, %v1265
        %v1270 = vadd.f32 %v1252, %v1266
        %v1271 = vadd.f32 %v1253, %v1265
        %v1272 = vadd.f32 %v1254, %v1266
        %v1273 = vadd.f32 %v1255, %v1265
        %v1274 = vadd.f32 %v1256, %v1266
        %v1275 = vadd.f32 %v1257, %v1265
        %v1276 = vadd.f32 %v1258, %v1266
        %v1277 = vadd.f32 %v1259, %v1265
        %v1278 = vadd.f32 %v1260, %v1266
        %v1279 = vadd.f32 %v1261, %v1265
        %v1280 = vadd.f32 %v1262, %v1266
        %v1281 = vadd.f32 %v1263, %v1265
        %v1282 = vadd.f32 %v1264, %v1266
        %v1283 = vmax.f32 %v1267, %v1268
        %v1284 = vrot.slane %v1283, 4
        %v1285 = vmax.f32 %v1283, %v1284
        %v1286 = vrot.slane %v1285, 2
        %v1287 = vmax.f32 %v1285, %v1286
        %v1288 = vrot.slane %v1287, 1
        %v1289 = vmax.f32 %v1287, %v1288
        %v1290 = vmax.f32 %v1269, %v1270
        %v1291 = vrot.slane %v1290, 4
        %v1292 = vmax.f32 %v1290, %v1291
        %v1293 = vrot.slane %v1292, 2
        %v1294 = vmax.f32 %v1292, %v1293
        %v1295 = vrot.slane %v1294, 1
        %v1296 = vmax.f32 %v1294, %v1295
        %v1297 = vmax.f32 %v1271, %v1272
        %v1298 = vrot.slane %v1297, 4
        %v1299 = vmax.f32 %v1297, %v1298
        %v1300 = vrot.slane %v1299, 2
        %v1301 = vmax.f32 %v1299, %v1300
        %v1302 = vrot.slane %v1301, 1
        %v1303 = vmax.f32 %v1301, %v1302
        %v1304 = vmax.f32 %v1273, %v1274
        %v1305 = vrot.slane %v1304, 4
        %v1306 = vmax.f32 %v1304, %v1305
        %v1307 = vrot.slane %v1306, 2
        %v1308 = vmax.f32 %v1306, %v1307
        %v1309 = vrot.slane %v1308, 1
        %v1310 = vmax.f32 %v1308, %v1309
        %v1311 = vmax.f32 %v1275, %v1276
        %v1312 = vrot.slane %v1311, 4
        %v1313 = vmax.f32 %v1311, %v1312
        %v1314 = vrot.slane %v1313, 2
        %v1315 = vmax.f32 %v1313, %v1314
        %v1316 = vrot.slane %v1315, 1
        %v1317 = vmax.f32 %v1315, %v1316
        %v1318 = vmax.f32 %v1277, %v1278
        %v1319 = vrot.slane %v1318, 4
        %v1320 = vmax.f32 %v1318, %v1319
        %v1321 = vrot.slane %v1320, 2
        %v1322 = vmax.f32 %v1320, %v1321
        %v1323 = vrot.slane %v1322, 1
        %v1324 = vmax.f32 %v1322, %v1323
        %v1325 = vmax.f32 %v1279, %v1280
        %v1326 = vrot.slane %v1325, 4
        %v1327 = vmax.f32 %v1325, %v1326
        %v1328 = vrot.slane %v1327, 2
        %v1329 = vmax.f32 %v1327, %v1328
        %v1330 = vrot.slane %v1329, 1
        %v1331 = vmax.f32 %v1329, %v1330
        %v1332 = vmax.f32 %v1281, %v1282
        %v1333 = vrot.slane %v1332, 4
        %v1334 = vmax.f32 %v1332, %v1333
        %v1335 = vrot.slane %v1334, 2
        %v1336 = vmax.f32 %v1334, %v1335
        %v1337 = vrot.slane %v1336, 1
        %v1338 = vmax.f32 %v1336, %v1337
        %v1339 = vadd.f32 %v535, %v905
        %v1340 = vadd.f32 %v537, %v902
        %v1341 = vadd.f32 %v540, %v899
        %v1342 = vadd.f32 %v542, %v896
        %v1343 = vadd.f32 %v545, %v893
        %v1344 = vadd.f32 %v547, %v890
        %v1345 = vadd.f32 %v550, %v887
        %v1346 = vadd.f32 %v552, %v884
        %v1347 = vadd.f32 %v555, %v881
        %v1348 = vadd.f32 %v557, %v878
        %v1349 = vadd.f32 %v560, %v875
        %v1350 = vadd.f32 %v562, %v872
        %v1351 = vadd.f32 %v565, %v869
        %v1352 = vadd.f32 %v567, %v866
        %v1353 = vadd.f32 %v570, %v863
        %v1354 = vadd.f32 %v572, %v908
        %v1355 = vadd.f32 %v1339, %v1094
        %v1356 = vadd.f32 %v1340, %v1092
        %v1357 = vadd.f32 %v1341, %v1090
        %v1358 = vadd.f32 %v1342, %v1088
        %v1359 = vadd.f32 %v1343, %v1086
        %v1360 = vadd.f32 %v1344, %v1084
        %v1361 = vadd.f32 %v1345, %v1082
        %v1362 = vadd.f32 %v1346, %v1080
        %v1363 = vadd.f32 %v1347, %v1078
        %v1364 = vadd.f32 %v1348, %v1076
        %v1365 = vadd.f32 %v1349, %v1074
        %v1366 = vadd.f32 %v1350, %v1072
        %v1367 = vadd.f32 %v1351, %v1070
        %v1368 = vadd.f32 %v1352, %v1068
        %v1369 = vadd.f32 %v1353, %v1066
        %v1370 = vadd.f32 %v1354, %v1096
        %v1371 = vld [vmem:[#allocation7 + $0x1] sm:$0x1]
        %v1373 = vperm.slane %v1371, 0
        %v1375 = vadd.f32 %v1355, %v1373
        %v1376 = vadd.f32 %v1356, %v1373
        %v1377 = vadd.f32 %v1357, %v1373
        %v1378 = vadd.f32 %v1358, %v1373
        %v1379 = vadd.f32 %v1359, %v1373
        %v1380 = vadd.f32 %v1360, %v1373
        %v1381 = vadd.f32 %v1361, %v1373
        %v1382 = vadd.f32 %v1362, %v1373
        %v1383 = vadd.f32 %v1363, %v1373
        %v1384 = vadd.f32 %v1364, %v1373
        %v1385 = vadd.f32 %v1365, %v1373
        %v1386 = vadd.f32 %v1366, %v1373
        %v1387 = vadd.f32 %v1367, %v1373
        %v1388 = vadd.f32 %v1368, %v1373
        %v1389 = vadd.f32 %v1369, %v1373
        %v1390 = vadd.f32 %v1370, %v1373
        %v1391 = vmul.f32 %v1375, 0.1
        %v1392 = vmul.f32 %v1376, 0.1
        %v1393 = vmul.f32 %v1377, 0.1
        %v1394 = vmul.f32 %v1378, 0.1
        %v1395 = vmul.f32 %v1379, 0.1
        %v1396 = vmul.f32 %v1380, 0.1
        %v1397 = vmul.f32 %v1381, 0.1
        %v1398 = vmul.f32 %v1382, 0.1
        %v1399 = vmul.f32 %v1383, 0.1
        %v1400 = vmul.f32 %v1384, 0.1
        %v1401 = vmul.f32 %v1385, 0.1
        %v1402 = vmul.f32 %v1386, 0.1
        %v1403 = vmul.f32 %v1387, 0.1
        %v1404 = vmul.f32 %v1388, 0.1
        %v1405 = vmul.f32 %v1389, 0.1
        %v1406 = vmul.f32 %v1390, 0.1
        %v1407 = vmax.f32 %v1375, %v1391
        %v1408 = vmax.f32 %v1376, %v1392
        %v1409 = vmax.f32 %v1377, %v1393
        %v1410 = vmax.f32 %v1378, %v1394
        %v1411 = vmax.f32 %v1379, %v1395
        %v1412 = vmax.f32 %v1380, %v1396
        %v1413 = vmax.f32 %v1381, %v1397
        %v1414 = vmax.f32 %v1382, %v1398
        %v1415 = vmax.f32 %v1383, %v1399
        %v1416 = vmax.f32 %v1384, %v1400
        %v1417 = vmax.f32 %v1385, %v1401
        %v1418 = vmax.f32 %v1386, %v1402
        %v1419 = vmax.f32 %v1387, %v1403
        %v1420 = vmax.f32 %v1388, %v1404
        %v1421 = vmax.f32 %v1389, %v1405
        %v1422 = vmax.f32 %v1390, %v1406
        %v1423 = vld [vmem:[#allocation8 + $0x8] sm:$0xff]
        %v1424 = vld [vmem:[#allocation8 + $0x20] sm:$0xff]
        %v1425 = vadd.f32 %v1407, %v1423
        %v1426 = vadd.f32 %v1408, %v1424
        %v1427 = vadd.f32 %v1409, %v1423
        %v1428 = vadd.f32 %v1410, %v1424
        %v1429 = vadd.f32 %v1411, %v1423
        %v1430 = vadd.f32 %v1412, %v1424
        %v1431 = vadd.f32 %v1413, %v1423
        %v1432 = vadd.f32 %v1414, %v1424
        %v1433 = vadd.f32 %v1415, %v1423
        %v1434 = vadd.f32 %v1416, %v1424
        %v1435 = vadd.f32 %v1417, %v1423
        %v1436 = vadd.f32 %v1418, %v1424
        %v1437 = vadd.f32 %v1419, %v1423
        %v1438 = vadd.f32 %v1420, %v1424
        %v1439 = vadd.f32 %v1421, %v1423
        %v1440 = vadd.f32 %v1422, %v1424
        %v1441 = vmax.f32 %v1425, %v1426
        %v1442 = vrot.slane %v1441, 4
        %v1443 = vmax.f32 %v1441, %v1442
        %v1444 = vrot.slane %v1443, 2
        %v1445 = vmax.f32 %v1443, %v1444
        %v1446 = vrot.slane %v1445, 1
        %v1447 = vmax.f32 %v1445, %v1446
        %v1448 = vmax.f32 %v1427, %v1428
        %v1449 = vrot.slane %v1448, 4
        %v1450 = vmax.f32 %v1448, %v1449
        %v1451 = vrot.slane %v1450, 2
        %v1452 = vmax.f32 %v1450, %v1451
        %v1453 = vrot.slane %v1452, 1
        %v1454 = vmax.f32 %v1452, %v1453
        %v1455 = vmax.f32 %v1429, %v1430
        %v1456 = vrot.slane %v1455, 4
        %v1457 = vmax.f32 %v1455, %v1456
        %v1458 = vrot.slane %v1457, 2
        %v1459 = vmax.f32 %v1457, %v1458
        %v1460 = vrot.slane %v1459, 1
        %v1461 = vmax.f32 %v1459, %v1460
        %v1462 = vmax.f32 %v1431, %v1432
        %v1463 = vrot.slane %v1462, 4
        %v1464 = vmax.f32 %v1462, %v1463
        %v1465 = vrot.slane %v1464, 2
        %v1466 = vmax.f32 %v1464, %v1465
        %v1467 = vrot.slane %v1466, 1
        %v1468 = vmax.f32 %v1466, %v1467
        %v1469 = vmax.f32 %v1433, %v1434
        %v1470 = vrot.slane %v1469, 4
        %v1471 = vmax.f32 %v1469, %v1470
        %v1472 = vrot.slane %v1471, 2
        %v1473 = vmax.f32 %v1471, %v1472
        %v1474 = vrot.slane %v1473, 1
        %v1475 = vmax.f32 %v1473, %v1474
        %v1476 = vmax.f32 %v1435, %v1436
        %v1477 = vrot.slane %v1476, 4
        %v1478 = vmax.f32 %v1476, %v1477
        %v1479 = vrot.slane %v1478, 2
        %v1480 = vmax.f32 %v1478, %v1479
        %v1481 = vrot.slane %v1480, 1
        %v1482 = vmax.f32 %v1480, %v1481
        %v1483 = vmax.f32 %v1437, %v1438
        %v1484 = vrot.slane %v1483, 4
        %v1485 = vmax.f32 %v1483, %v1484
        %v1486 = vrot.slane %v1485, 2
        %v1487 = vmax.f32 %v1485, %v1486
        %v1488 = vrot.slane %v1487, 1
        %v1489 = vmax.f32 %v1487, %v1488
        %v1490 = vmax.f32 %v1439, %v1440
        %v1491 = vrot.slane %v1490, 4
        %v1492 = vmax.f32 %v1490, %v1491
        %v1493 = vrot.slane %v1492, 2
        %v1494 = vmax.f32 %v1492, %v1493
        %v1495 = vrot.slane %v1494, 1
        %v1496 = vmax.f32 %v1494, %v1495
        %v1497 = vadd.f32 %v584, %v906
        %v1498 = vadd.f32 %v586, %v903
        %v1499 = vadd.f32 %v589, %v900
        %v1500 = vadd.f32 %v591, %v897
        %v1501 = vadd.f32 %v594, %v894
        %v1502 = vadd.f32 %v596, %v891
        %v1503 = vadd.f32 %v599, %v888
        %v1504 = vadd.f32 %v601, %v885
        %v1505 = vadd.f32 %v604, %v882
        %v1506 = vadd.f32 %v606, %v879
        %v1507 = vadd.f32 %v609, %v876
        %v1508 = vadd.f32 %v611, %v873
        %v1509 = vadd.f32 %v614, %v870
        %v1510 = vadd.f32 %v616, %v867
        %v1511 = vadd.f32 %v619, %v864
        %v1512 = vadd.f32 %v621, %v909
        %v1513 = vadd.f32 %v1497, %v1095
        %v1514 = vadd.f32 %v1498, %v1093
        %v1515 = vadd.f32 %v1499, %v1091
        %v1516 = vadd.f32 %v1500, %v1089
        %v1517 = vadd.f32 %v1501, %v1087
        %v1518 = vadd.f32 %v1502, %v1085
        %v1519 = vadd.f32 %v1503, %v1083
        %v1520 = vadd.f32 %v1504, %v1081
        %v1521 = vadd.f32 %v1505, %v1079
        %v1522 = vadd.f32 %v1506, %v1077
        %v1523 = vadd.f32 %v1507, %v1075
        %v1524 = vadd.f32 %v1508, %v1073
        %v1525 = vadd.f32 %v1509, %v1071
        %v1526 = vadd.f32 %v1510, %v1069
        %v1527 = vadd.f32 %v1511, %v1067
        %v1528 = vadd.f32 %v1512, %v1097
        %v1529 = vadd.f32 %v1513, %v1195
        %v1530 = vadd.f32 %v1514, %v1194
        %v1531 = vadd.f32 %v1515, %v1193
        %v1532 = vadd.f32 %v1516, %v1192
        %v1533 = vadd.f32 %v1517, %v1191
        %v1534 = vadd.f32 %v1518, %v1190
        %v1535 = vadd.f32 %v1519, %v1189
        %v1536 = vadd.f32 %v1520, %v1188
        %v1537 = vadd.f32 %v1521, %v1187
        %v1538 = vadd.f32 %v1522, %v1186
        %v1539 = vadd.f32 %v1523, %v1185
        %v1540 = vadd.f32 %v1524, %v1184
        %v1541 = vadd.f32 %v1525, %v1183
        %v1542 = vadd.f32 %v1526, %v1182
        %v1543 = vadd.f32 %v1527, %v1181
        %v1544 = vadd.f32 %v1528, %v1196
        %v1545 = vld [vmem:[#allocation7 + $0x2] sm:$0x1]
        %v1547 = vperm.slane %v1545, 0
        %v1549 = vadd.f32 %v1529, %v1547
        %v1550 = vadd.f32 %v1530, %v1547
        %v1551 = vadd.f32 %v1531, %v1547
        %v1552 = vadd.f32 %v1532, %v1547
        %v1553 = vadd.f32 %v1533, %v1547
        %v1554 = vadd.f32 %v1534, %v1547
        %v1555 = vadd.f32 %v1535, %v1547
        %v1556 = vadd.f32 %v1536, %v1547
        %v1557 = vadd.f32 %v1537, %v1547
        %v1558 = vadd.f32 %v1538, %v1547
        %v1559 = vadd.f32 %v1539, %v1547
        %v1560 = vadd.f32 %v1540, %v1547
        %v1561 = vadd.f32 %v1541, %v1547
        %v1562 = vadd.f32 %v1542, %v1547
        %v1563 = vadd.f32 %v1543, %v1547
        %v1564 = vadd.f32 %v1544, %v1547
        %v1565 = vmul.f32 %v1549, 0.1
        %v1566 = vmul.f32 %v1550, 0.1
        %v1567 = vmul.f32 %v1551, 0.1
        %v1568 = vmul.f32 %v1552, 0.1
        %v1569 = vmul.f32 %v1553, 0.1
        %v1570 = vmul.f32 %v1554, 0.1
        %v1571 = vmul.f32 %v1555, 0.1
        %v1572 = vmul.f32 %v1556, 0.1
        %v1573 = vmul.f32 %v1557, 0.1
        %v1574 = vmul.f32 %v1558, 0.1
        %v1575 = vmul.f32 %v1559, 0.1
        %v1576 = vmul.f32 %v1560, 0.1
        %v1577 = vmul.f32 %v1561, 0.1
        %v1578 = vmul.f32 %v1562, 0.1
        %v1579 = vmul.f32 %v1563, 0.1
        %v1580 = vmul.f32 %v1564, 0.1
        %v1581 = vmax.f32 %v1549, %v1565
        %v1582 = vmax.f32 %v1550, %v1566
        %v1583 = vmax.f32 %v1551, %v1567
        %v1584 = vmax.f32 %v1552, %v1568
        %v1585 = vmax.f32 %v1553, %v1569
        %v1586 = vmax.f32 %v1554, %v1570
        %v1587 = vmax.f32 %v1555, %v1571
        %v1588 = vmax.f32 %v1556, %v1572
        %v1589 = vmax.f32 %v1557, %v1573
        %v1590 = vmax.f32 %v1558, %v1574
        %v1591 = vmax.f32 %v1559, %v1575
        %v1592 = vmax.f32 %v1560, %v1576
        %v1593 = vmax.f32 %v1561, %v1577
        %v1594 = vmax.f32 %v1562, %v1578
        %v1595 = vmax.f32 %v1563, %v1579
        %v1596 = vmax.f32 %v1564, %v1580
        %v1597 = vld [vmem:[#allocation8 + $0x10] sm:$0xff]
        %v1598 = vld [vmem:[#allocation8 + $0x28] sm:$0xff]
        %v1599 = vadd.f32 %v1581, %v1597
        %v1600 = vadd.f32 %v1582, %v1598
        %v1601 = vadd.f32 %v1583, %v1597
        %v1602 = vadd.f32 %v1584, %v1598
        %v1603 = vadd.f32 %v1585, %v1597
        %v1604 = vadd.f32 %v1586, %v1598
        %v1605 = vadd.f32 %v1587, %v1597
        %v1606 = vadd.f32 %v1588, %v1598
        %v1607 = vadd.f32 %v1589, %v1597
        %v1608 = vadd.f32 %v1590, %v1598
        %v1609 = vadd.f32 %v1591, %v1597
        %v1610 = vadd.f32 %v1592, %v1598
        %v1611 = vadd.f32 %v1593, %v1597
        %v1612 = vadd.f32 %v1594, %v1598
        %v1613 = vadd.f32 %v1595, %v1597
        %v1614 = vadd.f32 %v1596, %v1598
        %v1615 = vmax.f32 %v1599, %v1600
        %v1616 = vrot.slane %v1615, 4
        %v1617 = vmax.f32 %v1615, %v1616
        %v1618 = vrot.slane %v1617, 2
        %v1619 = vmax.f32 %v1617, %v1618
        %v1620 = vrot.slane %v1619, 1
        %v1621 = vmax.f32 %v1619, %v1620
        %v1622 = vmax.f32 %v1601, %v1602
        %v1623 = vrot.slane %v1622, 4
        %v1624 = vmax.f32 %v1622, %v1623
        %v1625 = vrot.slane %v1624, 2
        %v1626 = vmax.f32 %v1624, %v1625
        %v1627 = vrot.slane %v1626, 1
        %v1628 = vmax.f32 %v1626, %v1627
        %v1629 = vmax.f32 %v1603, %v1604
        %v1630 = vrot.slane %v1629, 4
        %v1631 = vmax.f32 %v1629, %v1630
        %v1632 = vrot.slane %v1631, 2
        %v1633 = vmax.f32 %v1631, %v1632
        %v1634 = vrot.slane %v1633, 1
        %v1635 = vmax.f32 %v1633, %v1634
        %v1636 = vmax.f32 %v1605, %v1606
        %v1637 = vrot.slane %v1636, 4
        %v1638 = vmax.f32 %v1636, %v1637
        %v1639 = vrot.slane %v1638, 2
        %v1640 = vmax.f32 %v1638, %v1639
        %v1641 = vrot.slane %v1640, 1
        %v1642 = vmax.f32 %v1640, %v1641
        %v1643 = vmax.f32 %v1607, %v1608
        %v1644 = vrot.slane %v1643, 4
        %v1645 = vmax.f32 %v1643, %v1644
        %v1646 = vrot.slane %v1645, 2
        %v1647 = vmax.f32 %v1645, %v1646
        %v1648 = vrot.slane %v1647, 1
        %v1649 = vmax.f32 %v1647, %v1648
        %v1650 = vmax.f32 %v1609, %v1610
        %v1651 = vrot.slane %v1650, 4
        %v1652 = vmax.f32 %v1650, %v1651
        %v1653 = vrot.slane %v1652, 2
        %v1654 = vmax.f32 %v1652, %v1653
        %v1655 = vrot.slane %v1654, 1
        %v1656 = vmax.f32 %v1654, %v1655
        %v1657 = vmax.f32 %v1611, %v1612
        %v1658 = vrot.slane %v1657, 4
        %v1659 = vmax.f32 %v1657, %v1658
        %v1660 = vrot.slane %v1659, 2
        %v1661 = vmax.f32 %v1659, %v1660
        %v1662 = vrot.slane %v1661, 1
        %v1663 = vmax.f32 %v1661, %v1662
        %v1664 = vmax.f32 %v1613, %v1614
        %v1665 = vrot.slane %v1664, 4
        %v1666 = vmax.f32 %v1664, %v1665
        %v1667 = vrot.slane %v1666, 2
        %v1668 = vmax.f32 %v1666, %v1667
        %v1669 = vrot.slane %v1668, 1
        %v1670 = vmax.f32 %v1668, %v1669
        %vm1679 = vcmask 1041409
        %v1680 = vsel %vm1679, %v1296, %v1289
        %vm1681 = vcmask 1042434
        %v1682 = vsel %vm1681, %v1303, %v1680
        %vm1683 = vcmask 1043459
        %v1684 = vsel %vm1683, %v1310, %v1682
        %vm1685 = vcmask 1044484
        %v1686 = vsel %vm1685, %v1317, %v1684
        %vm1687 = vcmask 1045509
        %v1688 = vsel %vm1687, %v1324, %v1686
        %vm1689 = vcmask 1046534
        %v1690 = vsel %vm1689, %v1331, %v1688
        %vm1691 = vcmask 1047559
        %v1692 = vsel %vm1691, %v1338, %v1690
        %v1702 = vsel %vm1679, %v1454, %v1447
        %v1703 = vsel %vm1681, %v1461, %v1702
        %v1704 = vsel %vm1683, %v1468, %v1703
        %v1705 = vsel %vm1685, %v1475, %v1704
        %v1706 = vsel %vm1687, %v1482, %v1705
        %v1707 = vsel %vm1689, %v1489, %v1706
        %v1708 = vsel %vm1691, %v1496, %v1707
        %v1718 = vsel %vm1679, %v1628, %v1621
        %v1719 = vsel %vm1681, %v1635, %v1718
        %v1720 = vsel %vm1683, %v1642, %v1719
        %v1721 = vsel %vm1685, %v1649, %v1720
        %v1722 = vsel %vm1687, %v1656, %v1721
        %v1723 = vsel %vm1689, %v1663, %v1722
        %v1724 = vsel %vm1691, %v1670, %v1723
        %v1726 = vpack.c.bf16 %v1692, %v1692
        %v1727 = vpack.c.bf16 %v1708, %v1708
        %v1728 = vpack.c.bf16 %v1724, %v1724
        %v1729 = vld [vmem:[#allocation10] sm:$0xf]
        %v1730 = vld [vmem:[#allocation10 + $0x4] sm:$0xf]
        %v1731 = vld [vmem:[#allocation10 + $0x8] sm:$0xf]
        %v1732 = vld [vmem:[#allocation10 + $0xc] sm:$0xf]
        %v1733 = vld [vmem:[#allocation10 + $0x10] sm:$0xf]
        %v1734 = vld [vmem:[#allocation10 + $0x14] sm:$0xf]
        %v1735 = vld [vmem:[#allocation10 + $0x18] sm:$0xf]
        %v1736 = vld [vmem:[#allocation10 + $0x1c] sm:$0xf]
        %v1737 = vld [vmem:[#allocation10 + $0x20] sm:$0xf]
        %v1738 = vld [vmem:[#allocation10 + $0x24] sm:$0xf]
        %v1739 = vld [vmem:[#allocation10 + $0x28] sm:$0xf]
        %v1740 = vld [vmem:[#allocation10 + $0x2c] sm:$0xf]
        %v1741 = vld [vmem:[#allocation10 + $0x30] sm:$0xf]
        %v1742 = vld [vmem:[#allocation10 + $0x34] sm:$0xf]
        %v1743 = vld [vmem:[#allocation10 + $0x38] sm:$0xf]
        %v1744 = vld [vmem:[#allocation10 + $0x3c] sm:$0xf]
        %v1745 = vld [vmem:[#allocation10 + $0x40] sm:$0xf]
        %v1746 = vld [vmem:[#allocation10 + $0x44] sm:$0xf]
        %v1747 = vld [vmem:[#allocation10 + $0x48] sm:$0xf]
        %v1748 = vld [vmem:[#allocation10 + $0x4c] sm:$0xf]
        %v1749 = vld [vmem:[#allocation10 + $0x50] sm:$0xf]
        %v1750 = vld [vmem:[#allocation10 + $0x54] sm:$0xf]
        %v1751 = vld [vmem:[#allocation10 + $0x58] sm:$0xf]
        %v1752 = vld [vmem:[#allocation10 + $0x5c] sm:$0xf]
        %v1753 = vld [vmem:[#allocation10 + $0x60] sm:$0xf]
        %v1754 = vld [vmem:[#allocation10 + $0x64] sm:$0xf]
        %v1755 = vld [vmem:[#allocation10 + $0x68] sm:$0xf]
        %v1756 = vld [vmem:[#allocation10 + $0x6c] sm:$0xf]
        %v1757 = vld [vmem:[#allocation10 + $0x70] sm:$0xf]
        %v1758 = vld [vmem:[#allocation10 + $0x74] sm:$0xf]
        %v1759 = vld [vmem:[#allocation10 + $0x78] sm:$0xf]
        %v1760 = vld [vmem:[#allocation10 + $0x7c] sm:$0xf]
        %v1761 = vld [vmem:[#allocation10 + $0x80] sm:$0xf]
        %v1762 = vld [vmem:[#allocation10 + $0x84] sm:$0xf]
        %v1763 = vld [vmem:[#allocation10 + $0x88] sm:$0xf]
        %v1764 = vld [vmem:[#allocation10 + $0x8c] sm:$0xf]
        %v1765 = vld [vmem:[#allocation10 + $0x90] sm:$0xf]
        %v1766 = vld [vmem:[#allocation10 + $0x94] sm:$0xf]
        %v1767 = vld [vmem:[#allocation10 + $0x98] sm:$0xf]
        %v1768 = vld [vmem:[#allocation10 + $0x9c] sm:$0xf]
        %v1769 = vld [vmem:[#allocation10 + $0xa0] sm:$0xf]
        %v1770 = vld [vmem:[#allocation10 + $0xa4] sm:$0xf]
        %v1771 = vld [vmem:[#allocation10 + $0xa8] sm:$0xf]
        %v1772 = vld [vmem:[#allocation10 + $0xac] sm:$0xf]
        %v1773 = vld [vmem:[#allocation10 + $0xb0] sm:$0xf]
        %v1774 = vld [vmem:[#allocation10 + $0xb4] sm:$0xf]
        %v1775 = vld [vmem:[#allocation10 + $0xb8] sm:$0xf]
        %v1776 = vld [vmem:[#allocation10 + $0xbc] sm:$0xf]
        %v1777 = vld [vmem:[%s5] sm:$0x1]
        %v1779 = vperm.slane %v1777, 0
        %v1829 = vunpack.c.l.b16 %v1729
        %v1830 = vunpack.c.l.b16 %v1730
        %v1831 = vunpack.c.l.b16 %v1731
        %v1832 = vunpack.c.l.b16 %v1732
        %v1833 = vunpack.c.l.b16 %v1733
        %v1834 = vunpack.c.l.b16 %v1734
        %v1835 = vunpack.c.l.b16 %v1735
        %v1836 = vunpack.c.l.b16 %v1736
        %v1837 = vunpack.c.l.b16 %v1737
        %v1838 = vunpack.c.l.b16 %v1738
        %v1839 = vunpack.c.l.b16 %v1739
        %v1840 = vunpack.c.l.b16 %v1740
        %v1841 = vunpack.c.l.b16 %v1741
        %v1842 = vunpack.c.l.b16 %v1742
        %v1843 = vunpack.c.l.b16 %v1743
        %v1844 = vunpack.c.l.b16 %v1744
        %v1845 = vunpack.c.l.b16 %v1745
        %v1846 = vunpack.c.l.b16 %v1746
        %v1847 = vunpack.c.l.b16 %v1747
        %v1848 = vunpack.c.l.b16 %v1748
        %v1849 = vunpack.c.l.b16 %v1749
        %v1850 = vunpack.c.l.b16 %v1750
        %v1851 = vunpack.c.l.b16 %v1751
        %v1852 = vunpack.c.l.b16 %v1752
        %v1853 = vunpack.c.l.b16 %v1753
        %v1854 = vunpack.c.l.b16 %v1754
        %v1855 = vunpack.c.l.b16 %v1755
        %v1856 = vunpack.c.l.b16 %v1756
        %v1857 = vunpack.c.l.b16 %v1757
        %v1858 = vunpack.c.l.b16 %v1758
        %v1859 = vunpack.c.l.b16 %v1759
        %v1860 = vunpack.c.l.b16 %v1760
        %v1861 = vunpack.c.l.b16 %v1761
        %v1862 = vunpack.c.l.b16 %v1762
        %v1863 = vunpack.c.l.b16 %v1763
        %v1864 = vunpack.c.l.b16 %v1764
        %v1865 = vunpack.c.l.b16 %v1765
        %v1866 = vunpack.c.l.b16 %v1766
        %v1867 = vunpack.c.l.b16 %v1767
        %v1868 = vunpack.c.l.b16 %v1768
        %v1869 = vunpack.c.l.b16 %v1769
        %v1870 = vunpack.c.l.b16 %v1770
        %v1871 = vunpack.c.l.b16 %v1771
        %v1872 = vunpack.c.l.b16 %v1772
        %v1873 = vunpack.c.l.b16 %v1773
        %v1874 = vunpack.c.l.b16 %v1774
        %v1875 = vunpack.c.l.b16 %v1775
        %v1876 = vunpack.c.l.b16 %v1776
        %v1877 = vpack.c.b16 %v1830, %v1829
        %v1878 = vpack.c.b16 %v1832, %v1831
        %v1879 = vpack.c.b16 %v1834, %v1833
        %v1880 = vpack.c.b16 %v1836, %v1835
        %v1881 = vpack.c.b16 %v1838, %v1837
        %v1882 = vpack.c.b16 %v1840, %v1839
        %v1883 = vpack.c.b16 %v1842, %v1841
        %v1884 = vpack.c.b16 %v1844, %v1843
        %v1885 = vpack.c.b16 %v1846, %v1845
        %v1886 = vpack.c.b16 %v1848, %v1847
        %v1887 = vpack.c.b16 %v1850, %v1849
        %v1888 = vpack.c.b16 %v1852, %v1851
        %v1889 = vpack.c.b16 %v1854, %v1853
        %v1890 = vpack.c.b16 %v1856, %v1855
        %v1891 = vpack.c.b16 %v1858, %v1857
        %v1892 = vpack.c.b16 %v1860, %v1859
        %v1893 = vpack.c.b16 %v1862, %v1861
        %v1894 = vpack.c.b16 %v1864, %v1863
        %v1895 = vpack.c.b16 %v1866, %v1865
        %v1896 = vpack.c.b16 %v1868, %v1867
        %v1897 = vpack.c.b16 %v1870, %v1869
        %v1898 = vpack.c.b16 %v1872, %v1871
        %v1899 = vpack.c.b16 %v1874, %v1873
        %v1900 = vpack.c.b16 %v1876, %v1875
        %1925 = vmatpush.bf16.msra.mxu0 %v1884
        %1926 = vmatpush.bf16.msra.mxu0 %v1883
        %1927 = vmatpush.bf16.msra.mxu0 %v1882
        %1928 = vmatpush.bf16.msra.mxu0 %v1881
        %1929 = vmatpush.bf16.msra.mxu0 %v1880
        %1930 = vmatpush.bf16.msra.mxu0 %v1879
        %1931 = vmatpush.bf16.msra.mxu0 %v1878
        %1932 = vmatpush.bf16.msra.mxu0 %v1877
        %1933 = vmatmul.bf16.gmra.mxu0 %v1726
        %v1934 = vpop.f32.mrf.mxu0
        %v1935 = vadd.f32 %v1779, %v1934
        %v1936 = vpop.f32.mrf.mxu0
        %1937 = vdwg.mxu0
        %1938 = vmatpush.bf16.msra.mxu0 %v1892
        %1939 = vmatpush.bf16.msra.mxu0 %v1891
        %1940 = vmatpush.bf16.msra.mxu0 %v1890
        %1941 = vmatpush.bf16.msra.mxu0 %v1889
        %1942 = vmatpush.bf16.msra.mxu0 %v1888
        %1943 = vmatpush.bf16.msra.mxu0 %v1887
        %1944 = vmatpush.bf16.msra.mxu0 %v1886
        %1945 = vmatpush.bf16.msra.mxu0 %v1885
        %1946 = vmatmul.bf16.gmra.mxu0 %v1727
        %v1947 = vpop.f32.mrf.mxu0
        %v1948 = vadd.f32 %v1935, %v1947
        %v1949 = vpop.f32.mrf.mxu0
        %1950 = vdwg.mxu0
        %1951 = vmatpush.bf16.msra.mxu0 %v1900
        %1952 = vmatpush.bf16.msra.mxu0 %v1899
        %1953 = vmatpush.bf16.msra.mxu0 %v1898
        %1954 = vmatpush.bf16.msra.mxu0 %v1897
        %1955 = vmatpush.bf16.msra.mxu0 %v1896
        %1956 = vmatpush.bf16.msra.mxu0 %v1895
        %1957 = vmatpush.bf16.msra.mxu0 %v1894
        %1958 = vmatpush.bf16.msra.mxu0 %v1893
        %1959 = vmatmul.bf16.gmra.mxu0 %v1728
        %v1960 = vpop.f32.mrf.mxu0
        %v1961 = vadd.f32 %v1948, %v1960
        %v1962 = vpop.f32.mrf.mxu0
        %1963 = vdwg.mxu0
        %1964 = vst [vmem:[%s336] sm:$0xff] %v1961
        %s1965 = sand.u32 %s164, 1
        %s1966 = scalar_lea.sflag [#allocation4], %s1965
        %s1967 = sand.u32 %s164, 1
        %s1968 = smul.addr %s1967, 8
        %s1969 = scalar_lea.vmem [#allocation11], %s1968
        // Predicated region
        $region65: #{tpu_custom_call.1} parent=43 // pred_check
          %p1970 = pneg %p174
        $region66: #{tpu_custom_call.1} parent=43 // pred_check_branch
          %1972 = sbr.rel (%p1970) target = $region68
        $region67: #{tpu_custom_call.1} parent=43 // pred_region
          %1974 = vsyncadd %s1966, 0
          %s1975 = smul.addr %s25, 8
          %s1976 = scalar_lea.hbm %s6, %s1975
          %s1978 = sshll.u32 %s1969, 4
          %s1979 = int_to_ptr.vmem [resolvable:$true] %s1978
          %s1980 = sshll.u32 %s1976, 4
          %s1981 = int_to_ptr.hbm [resolvable:$true] %s1980
          %1983 = dma.vmem_to_hbm [thread:$0]  %s1979, 128, %s1981, %s1966
        $region68: #{tpu_custom_call.1} parent=43 // pred_fallthru
          _
      $region44: #{tpu_custom_call.1} parent=5 // pred_fallthru
        _
      %p1984 = scmp.le.s32.totalorder 2, %s20
      // Predicated region
      $region69: #{tpu_custom_call.1} parent=5 // pred_check
        %p1985 = pneg %p1984
      $region70: #{tpu_custom_call.1} parent=5 // pred_check_branch
        %1987 = sbr.rel (%p1985) target = $region72
      $region71: #{tpu_custom_call.1} parent=5 // pred_region
        %s1988 = ssub.s32 %s20, 2
        // Predicated region
        $region73: #{tpu_custom_call.1} parent=71 // pred_check
          %p1989 = pneg %p180
        $region74: #{tpu_custom_call.1} parent=71 // pred_check_branch
          %1991 = sbr.rel (%p1989) target = $region76
        $region75: #{tpu_custom_call.1} parent=71 // pred_region
          %s1992 = sand.u32 %s165, 1
          %s1993 = scalar_lea.sflag [#allocation4], %s1992
          %s1994 = sand.u32 %s165, 1
          %s1995 = smul.addr %s1994, 8
          %s1996 = scalar_lea.vmem [#allocation11], %s1995
          %1998 = dma.done %s1993, 128
        $region76: #{tpu_custom_call.1} parent=71 // pred_fallthru
          _
      $region72: #{tpu_custom_call.1} parent=5 // pred_fallthru
        _
    $region6: #{tpu_custom_call.1} parent=1 // loop_footer
      %s24 = sadd.s32 1, %s20
    $region7: #{tpu_custom_call.1} parent=1 // loop_footer_branch
      %19 = sbr.rel target = $region3
    $region8: #{tpu_custom_call.1} parent=1 // loop_exit
      _
    %1999 = vsyncpa [#allocation3], 1
    %s2000 = scalar_lea.sflag [#allocation3], 1
    %2001 = vsyncpa %s2000, 1
    %2002 = vsyncpa [#allocation6], 1
    %2003 = vsyncpa [#allocation9], 1
    %2004 = vsyncpa [#allocation4], 1
    %s2005 = scalar_lea.sflag [#allocation4], 1
    %2006 = vsyncpa %s2005, 1

</llo_original>
